<compile_context>
chip_gen: v6e
topology: v6e:2x2x1
jax: 0.10.0
libtpu: 0.0.40
codegen_flags: <defaults>
</compile_context>

<pallas_src>
import functools
import math

import jax
import jax.numpy as jnp
from jax.experimental import pallas as pl
from jax.experimental.pallas import tpu as pltpu

WIRE_OMEGA = 10.0
WIRE_SIGMA = 10.0  # default sigma0 of the real-Gabor WIRE layer


def _wire_act(omega, scale):
    # cos/exp hit the single EUP slot -- this is the compute roofline at large N.
    return jnp.cos(WIRE_OMEGA * omega) * jnp.exp(-jnp.square(WIRE_SIGMA * scale))


def _round_up(n, m):
    return ((n + m - 1) // m) * m


def _wiren_kernel(xT_ref, w0_ref, w1_ref, w2_ref, bias_ref, out_ref, *,
                  hidden, matmul_dtype):
    h2 = 2 * hidden
    xT = xT_ref[...].astype(matmul_dtype)              # (in_size, tile_m), lane-dense

    # Consolidated biases: [fb0; sb0; fb1; sb1; b2] as a (4H+out, 1) column.
    b0 = bias_ref[0:h2, :]                             # (2H, 1) -> lane broadcast
    b1 = bias_ref[h2:2 * h2, :]
    b2 = bias_ref[2 * h2:, :]                          # (out, 1)

    # ---- WIRE layer 0, fused freq||scale: (2H, in) @ (in, tile_m) ----
    # (K = in_size is tiny; a VPU broadcast-FMA would also work here, but the MXU
    #  is far from the bottleneck -- the EUP is.)
    z0 = jnp.dot(w0_ref[...].astype(matmul_dtype), xT,
                 preferred_element_type=jnp.float32) + b0
    h = _wire_act(z0[:hidden, :], z0[hidden:, :])      # (H, tile_m), f32

    # ---- WIRE layer 1, fused freq||scale: (2H, H) @ (H, tile_m) ----
    z1 = jnp.dot(w1_ref[...].astype(matmul_dtype), h.astype(matmul_dtype),
                 preferred_element_type=jnp.float32) + b1
    h = _wire_act(z1[:hidden, :], z1[hidden:, :])

    # ---- final Linear: (out, H) @ (H, tile_m) ----
    y = jnp.dot(w2_ref[...].astype(matmul_dtype), h.astype(matmul_dtype),
                preferred_element_type=jnp.float32) + b2
    out_ref[...] = y.astype(out_ref.dtype)


def wiren_mlp(x, params, *, tile_m=1024, matmul_dtype=jnp.float32):
    """x: (N, in_size) float32. params: PyTorch-convention (out, in) weights.

    Returns (N, out_size) float32, matching WIRENMLP.forward.
    """
    N, in_size = x.shape
    hidden = params["fw0"].shape[0]
    out_size = params["w2"].shape[0]
    assert hidden % 8 == 0, "hidden size must be a multiple of 8 (sublane tiling)"

    # --- glue: fuse freq/scale weights, consolidate biases, transpose x ---
    w0 = jnp.concatenate([params["fw0"], params["sw0"]], axis=0)        # (2H, in)
    w1 = jnp.concatenate([params["fw1"], params["sw1"]], axis=0)        # (2H, H)
    w2 = params["w2"]                                                   # (out, H)
    bias = jnp.concatenate(
        [params["fb0"], params["sb0"], params["fb1"], params["sb1"], params["b2"]]
    ).reshape(-1, 1).astype(jnp.float32)                                # (4H+out, 1)
    if matmul_dtype != jnp.float32:                                     # v6e/v7x option
        w0, w1, w2 = (w.astype(matmul_dtype) for w in (w0, w1, w2))

    # Sample axis -> lanes; pad N up to a multiple of tile_m (padded rows are
    # harmless through the activation and are sliced off below).
    tile_m = max(128, min(tile_m, _round_up(N, 128)))
    n_pad = _round_up(N, tile_m)
    xT = jnp.pad(x, ((0, n_pad - N), (0, 0))).T                         # (in, n_pad)

    # NOTE: on v7x (2 TensorCores) prefer an even grid length >= 2 so both TCs get work.
    grid = (n_pad // tile_m,)

    def const_spec(shape):
        return pl.BlockSpec(shape, lambda i: (0, 0))   # resident across the grid

    kernel = functools.partial(_wiren_kernel, hidden=hidden, matmul_dtype=matmul_dtype)

    yT = pl.pallas_call(
        kernel,
        out_shape=jax.ShapeDtypeStruct((out_size, n_pad), jnp.float32),
        grid_spec=pltpu.PrefetchScalarGridSpec(
            num_scalar_prefetch=0,
            grid=grid,
            in_specs=[
                pl.BlockSpec((in_size, tile_m), lambda i: (0, i)),      # x^T tile
                const_spec(w0.shape),
                const_spec(w1.shape),
                const_spec(w2.shape),
                const_spec(bias.shape),
            ],
            out_specs=pl.BlockSpec((out_size, tile_m), lambda i: (0, i)),
        ),
        compiler_params=pltpu.CompilerParams(
            dimension_semantics=("parallel",)),
    )(xT, w0, w1, w2, bias)

    return yT[:, :N].T


def init_params(key, in_size, hidden, out_size, omega=WIRE_OMEGA):
    """Deterministic init mirroring WIRENMLP.initialize_weights (+ default bias init)."""
    ks = jax.random.split(key, 11)
    u = lambda k, shape, b: jax.random.uniform(k, shape, jnp.float32, -b, b)

    b0w = 1.0 / in_size                       # layer 0 freq/scale weights
    b0b = 1.0 / math.sqrt(in_size)            # default nn.Linear bias init
    b1w = math.sqrt(6.0 / hidden) / omega     # layer 1 freq/scale weights
    b1b = 1.0 / math.sqrt(hidden)
    b2w = math.sqrt(6.0 / hidden) / omega     # final linear weight
    b2b = 1.0 / math.sqrt(hidden)

    return {
        "fw0": u(ks[0], (hidden, in_size), b0w), "fb0": u(ks[1], (hidden,), b0b),
        "sw0": u(ks[2], (hidden, in_size), b0w), "sb0": u(ks[3], (hidden,), b0b),
        "fw1": u(ks[4], (hidden, hidden), b1w),  "fb1": u(ks[5], (hidden,), b1b),
        "sw1": u(ks[6], (hidden, hidden), b1w),  "sb1": u(ks[7], (hidden,), b1b),
        "w2":  u(ks[8], (out_size, hidden), b2w), "b2": u(ks[9], (out_size,), b2b),
    }


def wiren_mlp_ref(x, p):
    """Pure-JAX reference with identical semantics (for the correctness check)."""
    def wire(x, fw, fb, sw, sb):
        return _wire_act(x @ fw.T + fb, x @ sw.T + sb)
    h = wire(x, p["fw0"], p["fb0"], p["sw0"], p["sb0"])
    h = wire(h, p["fw1"], p["fb1"], p["sw1"], p["sb1"])
    return h @ p["w2"].T + p["b2"]


if __name__ == "__main__":
    key = jax.random.PRNGKey(0)
    k_x, k_p = jax.random.split(key)

    # Small INR-style shapes: 256 coordinate points, 2-D coords -> 32 hidden -> 3 outputs.
    N, in_size, hidden, out_size = 256, 2, 32, 3

    params = init_params(k_p, in_size, hidden, out_size)
    x = jax.random.uniform(k_x, (N, in_size), jnp.float32, -1.0, 1.0)

    # tile_m=128 here only to exercise a multi-step grid at this tiny N; real INR
    # workloads should use the default (512-1024).
    y = wiren_mlp(x, params, tile_m=128)
    y = jax.block_until_ready(y)

    y_ref = wiren_mlp_ref(x, params)
    assert y.shape == (N, out_size)
    assert jnp.allclose(y, y_ref, atol=1e-5, rtol=1e-5), "Pallas result mismatch vs reference"

    print("KERNEL_OK")
</pallas_src>

<mosaic_0001>
module attributes {stable_mosaic.version = 11 : i64} {
  func.func @_wiren_kernel(%arg0: i32, %arg1: memref<2x128xf32, #tpu.memory_space<vmem>>, %arg2: memref<64x2xf32, #tpu.memory_space<vmem>>, %arg3: memref<64x32xf32, #tpu.memory_space<vmem>>, %arg4: memref<3x32xf32, #tpu.memory_space<vmem>>, %arg5: memref<131x1xf32, #tpu.memory_space<vmem>>, %arg6: memref<3x128xf32, #tpu.memory_space<vmem>>) attributes {dimension_semantics = [#tpu.dimension_semantics<parallel>], iteration_bounds = array<i64: 2>, scalar_prefetch = 0 : i64, scratch_operands = 0 : i64, tpu.core_type = #tpu.core_type<tc>, window_params = [{transform_indices = @transform_0, window_bounds = array<i64: 2, 128>}, {pipeline_mode = #tpu.pipeline_mode<synchronous>, transform_indices = @transform_1, window_bounds = array<i64: 64, 2>}, {pipeline_mode = #tpu.pipeline_mode<synchronous>, transform_indices = @transform_2, window_bounds = array<i64: 64, 32>}, {pipeline_mode = #tpu.pipeline_mode<synchronous>, transform_indices = @transform_3, window_bounds = array<i64: 3, 32>}, {pipeline_mode = #tpu.pipeline_mode<synchronous>, transform_indices = @transform_4, window_bounds = array<i64: 131, 1>}, {transform_indices = @transform_5, window_bounds = array<i64: 3, 128>}]} {
    %c0 = arith.constant 0 : index
    %c0_0 = arith.constant 0 : index
    %0 = vector.load %arg1[%c0, %c0_0] : memref<2x128xf32, #tpu.memory_space<vmem>>, vector<2x128xf32>
    %c0_1 = arith.constant 0 : index
    %c0_2 = arith.constant 0 : index
    %1 = vector.load %arg5[%c0_1, %c0_2] : memref<131x1xf32, #tpu.memory_space<vmem>>, vector<64x1xf32>
    %c64 = arith.constant 64 : index
    %c0_3 = arith.constant 0 : index
    %2 = vector.load %arg5[%c64, %c0_3] : memref<131x1xf32, #tpu.memory_space<vmem>>, vector<64x1xf32>
    %c128 = arith.constant 128 : index
    %c0_4 = arith.constant 0 : index
    %3 = vector.load %arg5[%c128, %c0_4] : memref<131x1xf32, #tpu.memory_space<vmem>>, vector<3x1xf32>
    %c0_5 = arith.constant 0 : index
    %c0_6 = arith.constant 0 : index
    %4 = vector.load %arg2[%c0_5, %c0_6] : memref<64x2xf32, #tpu.memory_space<vmem>>, vector<64x2xf32>
    %cst = arith.constant dense<0.000000e+00> : vector<64x128xf32>
    %5 = tpu.matmul %4, %0, %cst {dimension_numbers = #tpu.dot_dimension_numbers<[1], [0], [0], [1], [0, 0, 1, 1], [], []>} : vector<64x2xf32>, vector<2x128xf32>, vector<64x128xf32> -> vector<64x128xf32>
    %6 = vector.broadcast %1 : vector<64x1xf32> to vector<64x128xf32>
    %7 = arith.addf %5, %6 : vector<64x128xf32>
    %8 = vector.extract_strided_slice %7 {offsets = [0, 0], sizes = [32, 128], strides = [1, 1]} : vector<64x128xf32> to vector<32x128xf32>
    %9 = vector.extract_strided_slice %7 {offsets = [32, 0], sizes = [32, 128], strides = [1, 1]} : vector<64x128xf32> to vector<32x128xf32>
    %cst_7 = arith.constant 1.000000e+01 : f32
    %10 = vector.broadcast %cst_7 : f32 to vector<32x128xf32>
    %11 = arith.mulf %10, %8 : vector<32x128xf32>
    %12 = math.cos %11 : vector<32x128xf32>
    %cst_8 = arith.constant 1.000000e+01 : f32
    %13 = vector.broadcast %cst_8 : f32 to vector<32x128xf32>
    %14 = arith.mulf %13, %9 : vector<32x128xf32>
    %15 = arith.mulf %14, %14 : vector<32x128xf32>
    %cst_9 = arith.constant 0.000000e+00 : f32
    %16 = vector.broadcast %cst_9 : f32 to vector<32x128xf32>
    %17 = arith.subf %16, %15 : vector<32x128xf32>
    %18 = math.exp %17 : vector<32x128xf32>
    %19 = arith.mulf %12, %18 : vector<32x128xf32>
    %c0_10 = arith.constant 0 : index
    %c0_11 = arith.constant 0 : index
    %20 = vector.load %arg3[%c0_10, %c0_11] : memref<64x32xf32, #tpu.memory_space<vmem>>, vector<64x32xf32>
    %cst_12 = arith.constant dense<0.000000e+00> : vector<64x128xf32>
    %21 = tpu.matmul %20, %19, %cst_12 {dimension_numbers = #tpu.dot_dimension_numbers<[1], [0], [0], [1], [0, 0, 1, 1], [], []>} : vector<64x32xf32>, vector<32x128xf32>, vector<64x128xf32> -> vector<64x128xf32>
    %22 = vector.broadcast %2 : vector<64x1xf32> to vector<64x128xf32>
    %23 = arith.addf %21, %22 : vector<64x128xf32>
    %24 = vector.extract_strided_slice %23 {offsets = [0, 0], sizes = [32, 128], strides = [1, 1]} : vector<64x128xf32> to vector<32x128xf32>
    %25 = vector.extract_strided_slice %23 {offsets = [32, 0], sizes = [32, 128], strides = [1, 1]} : vector<64x128xf32> to vector<32x128xf32>
    %cst_13 = arith.constant 1.000000e+01 : f32
    %26 = vector.broadcast %cst_13 : f32 to vector<32x128xf32>
    %27 = arith.mulf %26, %24 : vector<32x128xf32>
    %28 = math.cos %27 : vector<32x128xf32>
    %cst_14 = arith.constant 1.000000e+01 : f32
    %29 = vector.broadcast %cst_14 : f32 to vector<32x128xf32>
    %30 = arith.mulf %29, %25 : vector<32x128xf32>
    %31 = arith.mulf %30, %30 : vector<32x128xf32>
    %cst_15 = arith.constant 0.000000e+00 : f32
    %32 = vector.broadcast %cst_15 : f32 to vector<32x128xf32>
    %33 = arith.subf %32, %31 : vector<32x128xf32>
    %34 = math.exp %33 : vector<32x128xf32>
    %35 = arith.mulf %28, %34 : vector<32x128xf32>
    %c0_16 = arith.constant 0 : index
    %c0_17 = arith.constant 0 : index
    %36 = vector.load %arg4[%c0_16, %c0_17] : memref<3x32xf32, #tpu.memory_space<vmem>>, vector<3x32xf32>
    %cst_18 = arith.constant dense<0.000000e+00> : vector<3x128xf32>
    %37 = tpu.matmul %36, %35, %cst_18 {dimension_numbers = #tpu.dot_dimension_numbers<[1], [0], [0], [1], [0, 0, 1, 1], [], []>} : vector<3x32xf32>, vector<32x128xf32>, vector<3x128xf32> -> vector<3x128xf32>
    %38 = vector.broadcast %3 : vector<3x1xf32> to vector<3x128xf32>
    %39 = arith.addf %37, %38 : vector<3x128xf32>
    %c0_19 = arith.constant 0 : index
    %c0_20 = arith.constant 0 : index
    %40 = vector.load %arg6[%c0_19, %c0_20] : memref<3x128xf32, #tpu.memory_space<vmem>>, vector<3x128xf32>
    tpu.vector_store %arg6[%c0_19, %c0_20], %39 {strides = array<i32>} : memref<3x128xf32, #tpu.memory_space<vmem>>, vector<3x128xf32>,
    return
  }
  func.func @transform_0(%arg0: i32) -> (i32, i32) {
    %c0_i32 = arith.constant 0 : i32
    %c0_i32_0 = arith.constant 0 : i32
    return %c0_i32, %arg0 : i32, i32
  }
  func.func @transform_1(%arg0: i32) -> (i32, i32) {
    %c0_i32 = arith.constant 0 : i32
    %c0_i32_0 = arith.constant 0 : i32
    %c0_i32_1 = arith.constant 0 : i32
    return %c0_i32, %c0_i32_0 : i32, i32
  }
  func.func @transform_2(%arg0: i32) -> (i32, i32) {
    %c0_i32 = arith.constant 0 : i32
    %c0_i32_0 = arith.constant 0 : i32
    %c0_i32_1 = arith.constant 0 : i32
    return %c0_i32, %c0_i32_0 : i32, i32
  }
  func.func @transform_3(%arg0: i32) -> (i32, i32) {
    %c0_i32 = arith.constant 0 : i32
    %c0_i32_0 = arith.constant 0 : i32
    %c0_i32_1 = arith.constant 0 : i32
    return %c0_i32, %c0_i32_0 : i32, i32
  }
  func.func @transform_4(%arg0: i32) -> (i32, i32) {
    %c0_i32 = arith.constant 0 : i32
    %c0_i32_0 = arith.constant 0 : i32
    %c0_i32_1 = arith.constant 0 : i32
    return %c0_i32, %c0_i32_0 : i32, i32
  }
  func.func @transform_5(%arg0: i32) -> (i32, i32) {
    %c0_i32 = arith.constant 0 : i32
    %c0_i32_0 = arith.constant 0 : i32
    return %c0_i32, %arg0 : i32, i32
  }
}

</mosaic_0001>

<llo_original>
// kernel: tpu_custom_call.1
$region0: #{tpu_custom_call.1}
  #allocation0 [shape = 'u32[]', space=smem, size = 0x4, offset = 0x4, fixed_abs, tag = 'smem constant byte address 0x4 - core index']
  #allocation1 [shape = 'u32[144,128]{1,0:T(1,128)}', space=vmem, size = 0x12000, scoped, tag = 'internal scratch']
  %s0 = inlined_call_operand.vmem [shape: f32[2,256], index: 0, kind: input, shape index: {}]
  %s1 = inlined_call_operand.vmem [shape: f32[64,2], index: 1, kind: input, shape index: {}]
  %s2 = inlined_call_operand.vmem [shape: f32[64,32], index: 2, kind: input, shape index: {}]
  %s3 = inlined_call_operand.vmem [shape: f32[3,32], index: 3, kind: input, shape index: {}]
  %s4 = inlined_call_operand.vmem [shape: f32[131,1], index: 4, kind: input, shape index: {}]
  %s5 = inlined_call_operand.hbm [shape: f32[3,256], index: 5, kind: output, shape index: {}]
  %s6 = sld [smem:[#allocation0]]
  $region53: #{tpu_custom_call.1} parent=0
    _
  %s8 = ssub.s32 1, %s6
  %s9 = scalar_select 0, %s8, %s6
  $region1: #{tpu_custom_call.1} parent=0
    #allocation2 [shape = 'u8[4096]{0}', space=vmem, size = 0x1000, scoped, tag = 'output window, operand 0']
    #allocation3 [shape = 's32[2]{0}', space=sflag, size = 0x8, scoped, tag = 'scoped memory for tpu_custom_call.1']
    %10 = vsyncpa [#allocation3], 0
    %s11 = scalar_lea.sflag [#allocation3], 1
    %12 = vsyncpa %s11, 0
    loop: start=0, step=1, limit=4
    $region2: #{tpu_custom_call.1} parent=1 // loop_pre_header
      _
    $region3: #{tpu_custom_call.1} parent=1 // loop_header
      %s14 = sphi 0, %s18
      %p15 = scmp.ge.s32.totalorder %s14, 4
      %s24 = sphi 0, %s26
      %s27 = sphi 0, %s24
      %s28 = sphi 0, %s27
      %s44 = sphi 0, %s28
      %s48 = sphi 0, %s48
      %s50 = sphi 0, %s48
      %s51 = sphi 0, %s50
      %s65 = sphi 0, %s51
      %s69 = sphi 0, %s69
      %s71 = sphi 0, %s69
      %s72 = sphi 0, %s71
      %s86 = sphi 0, %s72
      %s90 = sphi 0, %s90
      %s92 = sphi 0, %s90
      %s93 = sphi 0, %s92
      %s107 = sphi 0, %s93
      %s111 = sphi 0, %s111
      %s113 = sphi 0, %s111
      %s114 = sphi 0, %s113
      %s128 = sphi 0, %s114
      %s134 = sphi 0, %s136
      %s137 = sphi 0, %s134
      %s138 = sphi 0, %s137
      %s154 = sphi 0, %s138
    $region4: #{tpu_custom_call.1} parent=1 // loop_header_branch
      %17 = sbr.rel (%p15) target = $region8
    $region5: #{tpu_custom_call.1} parent=1 // loop_body
      %s19 = ssub.s32 %s14, 1
      %s20 = ssub.s32 %s14, 2
      %s21 = sadd.s32 %s14, 1
      %s22 = ssub.s32 %s14, %s21
      %p23 = scmp.eq.s32.totalorder %s22, 0
      %s25 = sadd.s32 %s24, 1
      %s26 = scalar_select %p23, %s24, %s25
      %p29 = pneg %p23
      %p30 = scmp.eq.s32.totalorder %s14, 1
      %p31 = por %p29, %p30
      %p32 = scmp.ne.s32.totalorder %s24, %s27
      %p33 = scmp.eq.s32.totalorder %s14, 0
      %p34 = por %p32, %p33
      %p35 = scmp.ne.s32.totalorder %s24, %s27
      %p36 = scmp.eq.s32.totalorder %s19, 1
      %p37 = por %p35, %p36
      %p38 = scmp.ne.s32.totalorder %s27, %s28
      %p39 = scmp.eq.s32.totalorder %s19, 0
      %p40 = por %p38, %p39
      %p41 = scmp.ne.s32.totalorder %s27, %s28
      %p42 = scmp.eq.s32.totalorder %s20, 1
      %p43 = por %p41, %p42
      %p45 = scmp.ne.s32.totalorder %s28, %s44
      %p46 = scmp.eq.s32.totalorder %s20, 0
      %p47 = por %p45, %p46
      %s49 = sadd.s32 %s48, 1
      %p52 = scmp.eq.s32.totalorder %s14, 1
      %p53 = scmp.ne.s32.totalorder %s48, %s50
      %p54 = scmp.eq.s32.totalorder %s14, 0
      %p55 = por %p53, %p54
      %p56 = scmp.ne.s32.totalorder %s48, %s50
      %p57 = scmp.eq.s32.totalorder %s19, 1
      %p58 = por %p56, %p57
      %p59 = scmp.ne.s32.totalorder %s50, %s51
      %p60 = scmp.eq.s32.totalorder %s19, 0
      %p61 = por %p59, %p60
      %p62 = scmp.ne.s32.totalorder %s50, %s51
      %p63 = scmp.eq.s32.totalorder %s20, 1
      %p64 = por %p62, %p63
      %p66 = scmp.ne.s32.totalorder %s51, %s65
      %p67 = scmp.eq.s32.totalorder %s20, 0
      %p68 = por %p66, %p67
      %s70 = sadd.s32 %s69, 1
      %p73 = scmp.eq.s32.totalorder %s14, 1
      %p74 = scmp.ne.s32.totalorder %s69, %s71
      %p75 = scmp.eq.s32.totalorder %s14, 0
      %p76 = por %p74, %p75
      %p77 = scmp.ne.s32.totalorder %s69, %s71
      %p78 = scmp.eq.s32.totalorder %s19, 1
      %p79 = por %p77, %p78
      %p80 = scmp.ne.s32.totalorder %s71, %s72
      %p81 = scmp.eq.s32.totalorder %s19, 0
      %p82 = por %p80, %p81
      %p83 = scmp.ne.s32.totalorder %s71, %s72
      %p84 = scmp.eq.s32.totalorder %s20, 1
      %p85 = por %p83, %p84
      %p87 = scmp.ne.s32.totalorder %s72, %s86
      %p88 = scmp.eq.s32.totalorder %s20, 0
      %p89 = por %p87, %p88
      %s91 = sadd.s32 %s90, 1
      %p94 = scmp.eq.s32.totalorder %s14, 1
      %p95 = scmp.ne.s32.totalorder %s90, %s92
      %p96 = scmp.eq.s32.totalorder %s14, 0
      %p97 = por %p95, %p96
      %p98 = scmp.ne.s32.totalorder %s90, %s92
      %p99 = scmp.eq.s32.totalorder %s19, 1
      %p100 = por %p98, %p99
      %p101 = scmp.ne.s32.totalorder %s92, %s93
      %p102 = scmp.eq.s32.totalorder %s19, 0
      %p103 = por %p101, %p102
      %p104 = scmp.ne.s32.totalorder %s92, %s93
      %p105 = scmp.eq.s32.totalorder %s20, 1
      %p106 = por %p104, %p105
      %p108 = scmp.ne.s32.totalorder %s93, %s107
      %p109 = scmp.eq.s32.totalorder %s20, 0
      %p110 = por %p108, %p109
      %s112 = sadd.s32 %s111, 1
      %p115 = scmp.eq.s32.totalorder %s14, 1
      %p116 = scmp.ne.s32.totalorder %s111, %s113
      %p117 = scmp.eq.s32.totalorder %s14, 0
      %p118 = por %p116, %p117
      %p119 = scmp.ne.s32.totalorder %s111, %s113
      %p120 = scmp.eq.s32.totalorder %s19, 1
      %p121 = por %p119, %p120
      %p122 = scmp.ne.s32.totalorder %s113, %s114
      %p123 = scmp.eq.s32.totalorder %s19, 0
      %p124 = por %p122, %p123
      %p125 = scmp.ne.s32.totalorder %s113, %s114
      %p126 = scmp.eq.s32.totalorder %s20, 1
      %p127 = por %p125, %p126
      %p129 = scmp.ne.s32.totalorder %s114, %s128
      %p130 = scmp.eq.s32.totalorder %s20, 0
      %p131 = por %p129, %p130
      %s132 = ssub.s32 %s14, %s21
      %p133 = scmp.eq.s32.totalorder %s132, 0
      %s135 = sadd.s32 %s134, 1
      %s136 = scalar_select %p133, %s134, %s135
      %p139 = pneg %p133
      %p140 = scmp.eq.s32.totalorder %s14, 1
      %p141 = por %p139, %p140
      %p142 = scmp.ne.s32.totalorder %s134, %s137
      %p143 = scmp.eq.s32.totalorder %s14, 0
      %p144 = por %p142, %p143
      %p145 = scmp.ne.s32.totalorder %s134, %s137
      %p146 = scmp.eq.s32.totalorder %s19, 1
      %p147 = por %p145, %p146
      %p148 = scmp.ne.s32.totalorder %s137, %s138
      %p149 = scmp.eq.s32.totalorder %s19, 0
      %p150 = por %p148, %p149
      %p151 = scmp.ne.s32.totalorder %s137, %s138
      %p152 = scmp.eq.s32.totalorder %s20, 1
      %p153 = por %p151, %p152
      %p155 = scmp.ne.s32.totalorder %s138, %s154
      %p156 = scmp.eq.s32.totalorder %s20, 0
      %p157 = por %p155, %p156
      %p158 = scmp.le.s32.totalorder 1, %s14
      %p159 = scmp.lt.s32.totalorder %s14, 3
      %p160 = pnand %p158, %p159
      %p161 = pneg %p160
      // Predicated region
      $region9: #{tpu_custom_call.1} parent=5 // pred_check
        _
      $region10: #{tpu_custom_call.1} parent=5 // pred_check_branch
        %163 = sbr.rel (%p160) target = $region12
      $region11: #{tpu_custom_call.1} parent=5 // pred_region
        %s164 = ssub.s32 %s14, 1
        // Predicated region
        $region13: #{tpu_custom_call.1} parent=11 // pred_check
          %p165 = pneg %p61
        $region14: #{tpu_custom_call.1} parent=11 // pred_check_branch
          %167 = sbr.rel (%p165) target = $region16
        $region15: #{tpu_custom_call.1} parent=11 // pred_region
          _
        $region16: #{tpu_custom_call.1} parent=11 // pred_fallthru
          _
        // Predicated region
        $region17: #{tpu_custom_call.1} parent=11 // pred_check
          %p168 = pneg %p82
        $region18: #{tpu_custom_call.1} parent=11 // pred_check_branch
          %170 = sbr.rel (%p168) target = $region20
        $region19: #{tpu_custom_call.1} parent=11 // pred_region
          _
        $region20: #{tpu_custom_call.1} parent=11 // pred_fallthru
          _
        // Predicated region
        $region21: #{tpu_custom_call.1} parent=11 // pred_check
          %p171 = pneg %p103
        $region22: #{tpu_custom_call.1} parent=11 // pred_check_branch
          %173 = sbr.rel (%p171) target = $region24
        $region23: #{tpu_custom_call.1} parent=11 // pred_region
          _
        $region24: #{tpu_custom_call.1} parent=11 // pred_fallthru
          _
        // Predicated region
        $region25: #{tpu_custom_call.1} parent=11 // pred_check
          %p174 = pneg %p124
        $region26: #{tpu_custom_call.1} parent=11 // pred_check_branch
          %176 = sbr.rel (%p174) target = $region28
        $region27: #{tpu_custom_call.1} parent=11 // pred_region
          _
        $region28: #{tpu_custom_call.1} parent=11 // pred_fallthru
          _
      $region12: #{tpu_custom_call.1} parent=5 // pred_fallthru
        _
      %p177 = scmp.lt.s32.totalorder %s14, 2
      // Predicated region
      $region29: #{tpu_custom_call.1} parent=5 // pred_check
        %p178 = pneg %p177
      $region30: #{tpu_custom_call.1} parent=5 // pred_check_branch
        %180 = sbr.rel (%p178) target = $region32
      $region31: #{tpu_custom_call.1} parent=5 // pred_region
        // Predicated region
        $region33: #{tpu_custom_call.1} parent=31 // pred_check
          %p181 = pneg %p34
        $region34: #{tpu_custom_call.1} parent=31 // pred_check_branch
          %183 = sbr.rel (%p181) target = $region36
        $region35: #{tpu_custom_call.1} parent=31 // pred_region
          %p184 = scmp.lt.s32.totalorder %s14, 1
          %s185 = scalar_select %p184, %s14, 1
          %s186 = smul.addr %s185, 2
          %s187 = scalar_lea.vmem %s0, %s186
        $region36: #{tpu_custom_call.1} parent=31 // pred_fallthru
          _
      $region32: #{tpu_custom_call.1} parent=5 // pred_fallthru
        _
      %p188 = scmp.le.s32.totalorder 1, %s14
      %p189 = scmp.lt.s32.totalorder %s14, 3
      %p190 = pnand %p188, %p189
      %p191 = pneg %p190
      // Predicated region
      $region37: #{tpu_custom_call.1} parent=5 // pred_check
        _
      $region38: #{tpu_custom_call.1} parent=5 // pred_check_branch
        %193 = sbr.rel (%p190) target = $region40
      $region39: #{tpu_custom_call.1} parent=5 // pred_region
        %s194 = ssub.s32 %s14, 1
        %p195 = scmp.lt.s32.totalorder %s19, 1
        %s196 = scalar_select %p195, %s19, 1
        %s197 = smul.addr %s196, 2
        %s198 = scalar_lea.vmem %s0, %s197
        %p199 = pneg %p40
        %p200 = pneg %p37
        %p201 = pneg %p61
        %p202 = pneg %p58
        %p203 = pneg %p82
        %p204 = pneg %p79
        %p205 = pneg %p103
        %p206 = pneg %p100
        %p207 = pneg %p124
        %p208 = pneg %p121
        %p209 = pneg %p150
        %p210 = pneg %p147
        %s211 = sand.u32 %s137, 1
        %s212 = scalar_lea.sflag [#allocation3], %s211
        %s213 = sand.u32 %s137, 1
        %s214 = smul.addr %s213, 4
        %s215 = scalar_lea.vmem [#allocation2], %s214
        %p216 = scmp.lt.s32.totalorder %s19, 1
        %s217 = scalar_select %p216, %s19, 1
        %s218 = smul.addr %s217, 2
        %s219 = scalar_lea.vmem %s0, %s218
        %v220 = vld [vmem:[%s219] sm:$0x3]
        %v221 = vld [vmem:[%s4] sm:$0xff]
        %v222 = vld [vmem:[%s4 + $0x8] sm:$0xff]
        %v223 = vld [vmem:[%s4 + $0x10] sm:$0xff]
        %v224 = vld [vmem:[%s4 + $0x18] sm:$0xff]
        %v225 = vld [vmem:[%s4 + $0x20] sm:$0xff]
        %v226 = vld [vmem:[%s4 + $0x28] sm:$0xff]
        %v227 = vld [vmem:[%s4 + $0x30] sm:$0xff]
        %v228 = vld [vmem:[%s4 + $0x38] sm:$0xff]
        %v229 = vld [vmem:[%s4 + $0x40] sm:$0xff]
        %v230 = vld [vmem:[%s4 + $0x48] sm:$0xff]
        %v231 = vld [vmem:[%s4 + $0x50] sm:$0xff]
        %v232 = vld [vmem:[%s4 + $0x58] sm:$0xff]
        %v233 = vld [vmem:[%s4 + $0x60] sm:$0xff]
        %v234 = vld [vmem:[%s4 + $0x68] sm:$0xff]
        %v235 = vld [vmem:[%s4 + $0x70] sm:$0xff]
        %v236 = vld [vmem:[%s4 + $0x78] sm:$0xff]
        %v237 = vld [vmem:[%s4 + $0x80] sm:$0x7]
        %v238 = vld [vmem:[%s1] sm:$0xff]
        %v239 = vld [vmem:[%s1 + $0x8] sm:$0xff]
        %v240 = vld [vmem:[%s1 + $0x10] sm:$0xff]
        %v241 = vld [vmem:[%s1 + $0x18] sm:$0xff]
        %v242 = vld [vmem:[%s1 + $0x20] sm:$0xff]
        %v243 = vld [vmem:[%s1 + $0x28] sm:$0xff]
        %v244 = vld [vmem:[%s1 + $0x30] sm:$0xff]
        %v245 = vld [vmem:[%s1 + $0x38] sm:$0xff]
        %247 = vset.pattern.permute.xlu0 0
        %248 = vperm.xlu0 %247, %v221
        %v249 = vpop.permute.xlu0 %248
        %252 = vset.pattern.permute.xlu0 0
        %253 = vperm.xlu0 %252, %v222
        %v254 = vpop.permute.xlu0 %253
        %257 = vset.pattern.permute.xlu0 0
        %258 = vperm.xlu0 %257, %v223
        %v259 = vpop.permute.xlu0 %258
        %262 = vset.pattern.permute.xlu0 0
        %263 = vperm.xlu0 %262, %v224
        %v264 = vpop.permute.xlu0 %263
        %267 = vset.pattern.permute.xlu0 0
        %268 = vperm.xlu0 %267, %v225
        %v269 = vpop.permute.xlu0 %268
        %272 = vset.pattern.permute.xlu0 0
        %273 = vperm.xlu0 %272, %v226
        %v274 = vpop.permute.xlu0 %273
        %277 = vset.pattern.permute.xlu0 0
        %278 = vperm.xlu0 %277, %v227
        %v279 = vpop.permute.xlu0 %278
        %282 = vset.pattern.permute.xlu0 0
        %283 = vperm.xlu0 %282, %v228
        %v284 = vpop.permute.xlu0 %283
        %vm286 = vcmask 15360
        %v288 = vsel %vm286, %v238, 0
        %v291 = vsel %vm286, %v239, 0
        %v294 = vsel %vm286, %v240, 0
        %v297 = vsel %vm286, %v241, 0
        %v300 = vsel %vm286, %v242, 0
        %v303 = vsel %vm286, %v243, 0
        %v306 = vsel %vm286, %v244, 0
        %v309 = vsel %vm286, %v245, 0
        %vm311 = vcmask 1041408
        %v313 = vsel %vm311, %v220, 0
        %315 = vmatprep.subr.mxu0 0.0
        %316 = vmatpush1.msra.mxu0 0.0
        %317 = vmatprep.subr.mxu0 0.0
        %318 = vmatpush1.msra.mxu0 0.0
        %319 = vmatprep.subr.mxu0 0.0
        %320 = vmatpush1.msra.mxu0 0.0
        %321 = vmatprep.subr.mxu0 0.0
        %322 = vmatpush1.msra.mxu0 0.0
        %323 = vmatprep.subr.mxu0 0.0
        %324 = vmatpush1.msra.mxu0 0.0
        %325 = vmatprep.subr.mxu0 0.0
        %326 = vmatpush1.msra.mxu0 0.0
        %327 = vmatprep.subr.mxu0 0.0
        %328 = vmatpush1.msra.mxu0 0.0
        %329 = vmatprep.subr.mxu0 0.0
        %330 = vmatpush1.msra.mxu0 0.0
        %331 = vmatprep.subr.mxu0 0.0
        %332 = vmatpush1.msra.mxu0 0.0
        %333 = vmatprep.subr.mxu0 0.0
        %334 = vmatpush1.msra.mxu0 0.0
        %335 = vmatprep.subr.mxu0 0.0
        %336 = vmatpush1.msra.mxu0 0.0
        %337 = vmatprep.subr.mxu0 0.0
        %338 = vmatpush1.msra.mxu0 0.0
        %339 = vmatprep.subr.mxu0 0.0
        %340 = vmatpush1.msra.mxu0 0.0
        %341 = vmatprep.subr.mxu0 0.0
        %342 = vmatpush1.msra.mxu0 0.0
        %343 = vmatprep.subr.mxu0 0.0
        %344 = vmatpush1.msra.mxu0 0.0
        %345 = vmatprep.subr.mxu0 0.0
        %346 = vmatpush1.msra.mxu0 %v313
        %347 = vmatprep.subr.mxu0 0.0
        %348 = vmatpush2.msra.mxu0 0.0
        %349 = vmatprep.subr.mxu0 0.0
        %350 = vmatpush2.msra.mxu0 0.0
        %351 = vmatprep.subr.mxu0 0.0
        %352 = vmatpush2.msra.mxu0 0.0
        %353 = vmatprep.subr.mxu0 0.0
        %354 = vmatpush2.msra.mxu0 0.0
        %355 = vmatprep.subr.mxu0 0.0
        %356 = vmatpush2.msra.mxu0 0.0
        %357 = vmatprep.subr.mxu0 0.0
        %358 = vmatpush2.msra.mxu0 0.0
        %359 = vmatprep.subr.mxu0 0.0
        %360 = vmatpush2.msra.mxu0 0.0
        %361 = vmatprep.subr.mxu0 0.0
        %362 = vmatpush2.msra.mxu0 0.0
        %363 = vmatprep.subr.mxu0 0.0
        %364 = vmatpush2.msra.mxu0 0.0
        %365 = vmatprep.subr.mxu0 0.0
        %366 = vmatpush2.msra.mxu0 0.0
        %367 = vmatprep.subr.mxu0 0.0
        %368 = vmatpush2.msra.mxu0 0.0
        %369 = vmatprep.subr.mxu0 0.0
        %370 = vmatpush2.msra.mxu0 0.0
        %371 = vmatprep.subr.mxu0 0.0
        %372 = vmatpush2.msra.mxu0 0.0
        %373 = vmatprep.subr.mxu0 0.0
        %374 = vmatpush2.msra.mxu0 0.0
        %375 = vmatprep.subr.mxu0 0.0
        %376 = vmatpush2.msra.mxu0 0.0
        %377 = vmatprep.subr.mxu0 0.0
        %378 = vmatpush2.msra.mxu0 0.0
        %379 = vmatprep.mubr.f32.mxu0 0.0
        %380 = vmatmul.mubr.f32.gmra.mxu0 %v288
        %v381 = vpop.f32.mrf.mxu0
        %v382 = vadd.f32 %v249, %v381
        %v383 = vpop.f32.mrf.mxu0
        %384 = vmatprep.mubr.f32.mxu0 0.0
        %385 = vmatmul.mubr.f32.gmra.mxu0 %v291
        %v386 = vpop.f32.mrf.mxu0
        %v387 = vadd.f32 %v254, %v386
        %v388 = vpop.f32.mrf.mxu0
        %389 = vmatprep.mubr.f32.mxu0 0.0
        %390 = vmatmul.mubr.f32.gmra.mxu0 %v294
        %v391 = vpop.f32.mrf.mxu0
        %v392 = vadd.f32 %v259, %v391
        %v393 = vpop.f32.mrf.mxu0
        %394 = vmatprep.mubr.f32.mxu0 0.0
        %395 = vmatmul.mubr.f32.gmra.mxu0 %v297
        %v396 = vpop.f32.mrf.mxu0
        %v397 = vadd.f32 %v264, %v396
        %v398 = vpop.f32.mrf.mxu0
        %399 = vmatprep.mubr.f32.mxu0 0.0
        %400 = vmatmul.mubr.f32.gmra.mxu0 %v300
        %v401 = vpop.f32.mrf.mxu0
        %v402 = vadd.f32 %v269, %v401
        %v403 = vpop.f32.mrf.mxu0
        %404 = vmatprep.mubr.f32.mxu0 0.0
        %405 = vmatmul.mubr.f32.gmra.mxu0 %v303
        %v406 = vpop.f32.mrf.mxu0
        %v407 = vadd.f32 %v274, %v406
        %v408 = vpop.f32.mrf.mxu0
        %409 = vmatprep.mubr.f32.mxu0 0.0
        %410 = vmatmul.mubr.f32.gmra.mxu0 %v306
        %v411 = vpop.f32.mrf.mxu0
        %v412 = vadd.f32 %v279, %v411
        %v413 = vpop.f32.mrf.mxu0
        %414 = vmatprep.mubr.f32.mxu0 0.0
        %415 = vmatmul.mubr.f32.gmra.mxu0 %v309
        %v416 = vpop.f32.mrf.mxu0
        %v417 = vadd.f32 %v284, %v416
        %v418 = vpop.f32.mrf.mxu0
        %419 = vdwg.mxu0
        %v420 = vmul.f32 %v382, 10.0
        %v421 = vmul.f32 %v387, 10.0
        %v422 = vmul.f32 %v392, 10.0
        %v423 = vmul.f32 %v397, 10.0
        %v424 = vand.u32 2147483647, %v420
        %vm425 = vcmp.le.f32.partialorder %v424, 0.7853982
        %vm426 = vcmp.lt.s32.totalorder %v420, 0
        %v427 = vand.u32 %v420, 2139095040
        %v428 = vshrl.u32 %v427, 23
        %v429 = vsub.s32 %v428, 127
        %v430 = vand.u32 2147483647, %v420
        %v431 = vand.u32 %v430, 8388607
        %v432 = vor.u32 %v431, 8388608
        %v433 = vsub.s32 0, %v432
        %v434 = vadd.s32 %v429, 1
        %vm435 = vcmp.gt.s32.totalorder %v434, 0
        %v436 = vsel %vm435, %v434, 0
        %v437 = vshrl.u32 %v436, 5
        %v438 = vand.u32 %v436, 31
        %v439 = vsub.s32 32, %v438
        %v440 = vshrl.u32 683565275, %v439
        %v441 = vshll.u32 683565275, %v438
        %v442 = vshrl.u32 2475754826, %v439
        %v443 = vor.u32 %v441, %v442
        %v444 = vshll.u32 2475754826, %v438
        %v445 = vshrl.u32 2131351028, %v439
        %v446 = vor.u32 %v444, %v445
        %v447 = vshll.u32 2131351028, %v438
        %v448 = vshrl.u32 2102212464, %v439
        %v449 = vor.u32 %v447, %v448
        %v450 = vshll.u32 2102212464, %v438
        %v451 = vshrl.u32 920167782, %v439
        %v452 = vor.u32 %v450, %v451
        %v453 = vshll.u32 920167782, %v438
        %v454 = vshrl.u32 1326507024, %v439
        %v455 = vor.u32 %v453, %v454
        %vm456 = vcmp.lt.s32.totalorder %v437, 1
        %vm457 = vcmp.lt.s32.totalorder %v437, 2
        %vm458 = vcmp.lt.s32.totalorder %v437, 3
        %vm459 = vcmp.lt.s32.totalorder %v437, 4
        %v460 = vsel %vm456, %v440, %v443
        %v461 = vsel %vm459, %v449, 2102212464
        %v462 = vsel %vm458, %v446, %v461
        %v463 = vsel %vm457, %v460, %v462
        %v464 = vsel %vm456, %v443, %v446
        %v465 = vsel %vm459, %v452, 920167782
        %v466 = vsel %vm458, %v449, %v465
        %v467 = vsel %vm457, %v464, %v466
        %v468 = vsel %vm456, %v446, %v449
        %v469 = vsel %vm459, %v455, 1326507024
        %v470 = vsel %vm458, %v452, %v469
        %v471 = vsel %vm457, %v468, %v470
        %v472 = vshll.u32 %v432, 8
        %v473 = vmul.u32.u64.compose %v472, %v471
        %v474 = vextract.low.u32 %v473
        %v475 = vextract.high.u32 %v473
        %v476 = vmul.u32.u64.compose %v472, %v467
        %v477 = vextract.low.u32 %v476
        %v478 = vextract.high.u32 %v476
        %v479 = vmul.u32 %v472, %v463
        %v480 = vadd.s32 %v475, %v477
        %vm481 = vc.u32 %v475, %v477
        %v482 = vadd.s32 %v478, 1
        %v483 = vsel %vm481, %v482, %v478
        %v484 = vadd.s32 %v479, %v483
        %v485 = vadd.s32 %v484, 536870912
        %v486 = vshrl.u32 %v485, 30
        %v487 = vshll.u32 %v486, 30
        %v488 = vsub.s32 %v484, %v487
        %vm489 = vcmp.lt.s32.totalorder %v488, 0
        %v490 = vsub.s32 0, %v488
        %v491 = vsel %vm489, %v490, %v488
        %v492 = vclz %v491
        %v493 = vsub.s32 %v492, 2
        %vm494 = vcmp.gt.s32.totalorder 0, %v493
        %v495 = vsel %vm494, 0, %v493
        %v496 = vsub.s32 32, %v495
        %v497 = vshll.u32 %v488, %v495
        %v498 = vshrl.u32 %v480, %v496
        %v499 = vor.u32 %v497, %v498
        %v500 = vsub.s32 4294967266, %v495
        %v501 = vadd.s32 %v500, 127
        %v502 = vshll.u32 %v501, 23
        %v503 = vor.u32 4788187, %v502
        %v504 = vand.u32 2147483647, %v503
        %v506 = vcvt.s32.f32 %v499
        %v507 = vmul.f32 %v506, %v504
        %v508 = vxor.u32 %v507, 2147483648
        %v509 = vsel %vm426, %v508, %v507
        %v510 = vsub.s32 4, %v486
        %v511 = vsel %vm426, %v510, %v486
        %v512 = vsel %vm425, %v420, %v509
        %v513 = vsel %vm425, 0, %v511
        %v514 = vcosq.f32.pop %v512
        %v515 = vsinq.f32.pop %v512
        %vm516 = vweird.f32 %v420
        %v517 = vand.u32 %v513, 3
        %vm518 = vcmp.lt.s32.totalorder %v517, 2
        %vm519 = vcmp.eq.s32.totalorder %v517, 0
        %v520 = vxor.u32 %v515, 2147483648
        %v521 = vsel %vm519, %v514, %v520
        %vm522 = vcmp.eq.s32.totalorder %v517, 2
        %v523 = vxor.u32 %v514, 2147483648
        %v524 = vsel %vm522, %v523, %v515
        %v525 = vsel %vm518, %v521, %v524
        %v526 = vsel %vm516, nan, %v525
        %v527 = vand.u32 2147483647, %v421
        %vm528 = vcmp.le.f32.partialorder %v527, 0.7853982
        %vm529 = vcmp.lt.s32.totalorder %v421, 0
        %v530 = vand.u32 %v421, 2139095040
        %v531 = vshrl.u32 %v530, 23
        %v532 = vsub.s32 %v531, 127
        %v533 = vand.u32 2147483647, %v421
        %v534 = vand.u32 %v533, 8388607
        %v535 = vor.u32 %v534, 8388608
        %v536 = vsub.s32 0, %v535
        %v537 = vadd.s32 %v532, 1
        %vm538 = vcmp.gt.s32.totalorder %v537, 0
        %v539 = vsel %vm538, %v537, 0
        %v540 = vshrl.u32 %v539, 5
        %v541 = vand.u32 %v539, 31
        %v542 = vsub.s32 32, %v541
        %v543 = vshrl.u32 683565275, %v542
        %v544 = vshll.u32 683565275, %v541
        %v545 = vshrl.u32 2475754826, %v542
        %v546 = vor.u32 %v544, %v545
        %v547 = vshll.u32 2475754826, %v541
        %v548 = vshrl.u32 2131351028, %v542
        %v549 = vor.u32 %v547, %v548
        %v550 = vshll.u32 2131351028, %v541
        %v551 = vshrl.u32 2102212464, %v542
        %v552 = vor.u32 %v550, %v551
        %v553 = vshll.u32 2102212464, %v541
        %v554 = vshrl.u32 920167782, %v542
        %v555 = vor.u32 %v553, %v554
        %v556 = vshll.u32 920167782, %v541
        %v557 = vshrl.u32 1326507024, %v542
        %v558 = vor.u32 %v556, %v557
        %vm559 = vcmp.lt.s32.totalorder %v540, 1
        %vm560 = vcmp.lt.s32.totalorder %v540, 2
        %vm561 = vcmp.lt.s32.totalorder %v540, 3
        %vm562 = vcmp.lt.s32.totalorder %v540, 4
        %v563 = vsel %vm559, %v543, %v546
        %v564 = vsel %vm562, %v552, 2102212464
        %v565 = vsel %vm561, %v549, %v564
        %v566 = vsel %vm560, %v563, %v565
        %v567 = vsel %vm559, %v546, %v549
        %v568 = vsel %vm562, %v555, 920167782
        %v569 = vsel %vm561, %v552, %v568
        %v570 = vsel %vm560, %v567, %v569
        %v571 = vsel %vm559, %v549, %v552
        %v572 = vsel %vm562, %v558, 1326507024
        %v573 = vsel %vm561, %v555, %v572
        %v574 = vsel %vm560, %v571, %v573
        %v575 = vshll.u32 %v535, 8
        %v576 = vmul.u32.u64.compose %v575, %v574
        %v577 = vextract.low.u32 %v576
        %v578 = vextract.high.u32 %v576
        %v579 = vmul.u32.u64.compose %v575, %v570
        %v580 = vextract.low.u32 %v579
        %v581 = vextract.high.u32 %v579
        %v582 = vmul.u32 %v575, %v566
        %v583 = vadd.s32 %v578, %v580
        %vm584 = vc.u32 %v578, %v580
        %v585 = vadd.s32 %v581, 1
        %v586 = vsel %vm584, %v585, %v581
        %v587 = vadd.s32 %v582, %v586
        %v588 = vadd.s32 %v587, 536870912
        %v589 = vshrl.u32 %v588, 30
        %v590 = vshll.u32 %v589, 30
        %v591 = vsub.s32 %v587, %v590
        %vm592 = vcmp.lt.s32.totalorder %v591, 0
        %v593 = vsub.s32 0, %v591
        %v594 = vsel %vm592, %v593, %v591
        %v595 = vclz %v594
        %v596 = vsub.s32 %v595, 2
        %vm597 = vcmp.gt.s32.totalorder 0, %v596
        %v598 = vsel %vm597, 0, %v596
        %v599 = vsub.s32 32, %v598
        %v600 = vshll.u32 %v591, %v598
        %v601 = vshrl.u32 %v583, %v599
        %v602 = vor.u32 %v600, %v601
        %v603 = vsub.s32 4294967266, %v598
        %v604 = vadd.s32 %v603, 127
        %v605 = vshll.u32 %v604, 23
        %v606 = vor.u32 4788187, %v605
        %v607 = vand.u32 2147483647, %v606
        %v609 = vcvt.s32.f32 %v602
        %v610 = vmul.f32 %v609, %v607
        %v611 = vxor.u32 %v610, 2147483648
        %v612 = vsel %vm529, %v611, %v610
        %v613 = vsub.s32 4, %v589
        %v614 = vsel %vm529, %v613, %v589
        %v615 = vsel %vm528, %v421, %v612
        %v616 = vsel %vm528, 0, %v614
        %v617 = vcosq.f32.pop %v615
        %v618 = vsinq.f32.pop %v615
        %vm619 = vweird.f32 %v421
        %v620 = vand.u32 %v616, 3
        %vm621 = vcmp.lt.s32.totalorder %v620, 2
        %vm622 = vcmp.eq.s32.totalorder %v620, 0
        %v623 = vxor.u32 %v618, 2147483648
        %v624 = vsel %vm622, %v617, %v623
        %vm625 = vcmp.eq.s32.totalorder %v620, 2
        %v626 = vxor.u32 %v617, 2147483648
        %v627 = vsel %vm625, %v626, %v618
        %v628 = vsel %vm621, %v624, %v627
        %v629 = vsel %vm619, nan, %v628
        %v630 = vand.u32 2147483647, %v422
        %vm631 = vcmp.le.f32.partialorder %v630, 0.7853982
        %vm632 = vcmp.lt.s32.totalorder %v422, 0
        %v633 = vand.u32 %v422, 2139095040
        %v634 = vshrl.u32 %v633, 23
        %v635 = vsub.s32 %v634, 127
        %v636 = vand.u32 2147483647, %v422
        %v637 = vand.u32 %v636, 8388607
        %v638 = vor.u32 %v637, 8388608
        %v639 = vsub.s32 0, %v638
        %v640 = vadd.s32 %v635, 1
        %vm641 = vcmp.gt.s32.totalorder %v640, 0
        %v642 = vsel %vm641, %v640, 0
        %v643 = vshrl.u32 %v642, 5
        %v644 = vand.u32 %v642, 31
        %v645 = vsub.s32 32, %v644
        %v646 = vshrl.u32 683565275, %v645
        %v647 = vshll.u32 683565275, %v644
        %v648 = vshrl.u32 2475754826, %v645
        %v649 = vor.u32 %v647, %v648
        %v650 = vshll.u32 2475754826, %v644
        %v651 = vshrl.u32 2131351028, %v645
        %v652 = vor.u32 %v650, %v651
        %v653 = vshll.u32 2131351028, %v644
        %v654 = vshrl.u32 2102212464, %v645
        %v655 = vor.u32 %v653, %v654
        %v656 = vshll.u32 2102212464, %v644
        %v657 = vshrl.u32 920167782, %v645
        %v658 = vor.u32 %v656, %v657
        %v659 = vshll.u32 920167782, %v644
        %v660 = vshrl.u32 1326507024, %v645
        %v661 = vor.u32 %v659, %v660
        %vm662 = vcmp.lt.s32.totalorder %v643, 1
        %vm663 = vcmp.lt.s32.totalorder %v643, 2
        %vm664 = vcmp.lt.s32.totalorder %v643, 3
        %vm665 = vcmp.lt.s32.totalorder %v643, 4
        %v666 = vsel %vm662, %v646, %v649
        %v667 = vsel %vm665, %v655, 2102212464
        %v668 = vsel %vm664, %v652, %v667
        %v669 = vsel %vm663, %v666, %v668
        %v670 = vsel %vm662, %v649, %v652
        %v671 = vsel %vm665, %v658, 920167782
        %v672 = vsel %vm664, %v655, %v671
        %v673 = vsel %vm663, %v670, %v672
        %v674 = vsel %vm662, %v652, %v655
        %v675 = vsel %vm665, %v661, 1326507024
        %v676 = vsel %vm664, %v658, %v675
        %v677 = vsel %vm663, %v674, %v676
        %v678 = vshll.u32 %v638, 8
        %v679 = vmul.u32.u64.compose %v678, %v677
        %v680 = vextract.low.u32 %v679
        %v681 = vextract.high.u32 %v679
        %v682 = vmul.u32.u64.compose %v678, %v673
        %v683 = vextract.low.u32 %v682
        %v684 = vextract.high.u32 %v682
        %v685 = vmul.u32 %v678, %v669
        %v686 = vadd.s32 %v681, %v683
        %vm687 = vc.u32 %v681, %v683
        %v688 = vadd.s32 %v684, 1
        %v689 = vsel %vm687, %v688, %v684
        %v690 = vadd.s32 %v685, %v689
        %v691 = vadd.s32 %v690, 536870912
        %v692 = vshrl.u32 %v691, 30
        %v693 = vshll.u32 %v692, 30
        %v694 = vsub.s32 %v690, %v693
        %vm695 = vcmp.lt.s32.totalorder %v694, 0
        %v696 = vsub.s32 0, %v694
        %v697 = vsel %vm695, %v696, %v694
        %v698 = vclz %v697
        %v699 = vsub.s32 %v698, 2
        %vm700 = vcmp.gt.s32.totalorder 0, %v699
        %v701 = vsel %vm700, 0, %v699
        %v702 = vsub.s32 32, %v701
        %v703 = vshll.u32 %v694, %v701
        %v704 = vshrl.u32 %v686, %v702
        %v705 = vor.u32 %v703, %v704
        %v706 = vsub.s32 4294967266, %v701
        %v707 = vadd.s32 %v706, 127
        %v708 = vshll.u32 %v707, 23
        %v709 = vor.u32 4788187, %v708
        %v710 = vand.u32 2147483647, %v709
        %v712 = vcvt.s32.f32 %v705
        %v713 = vmul.f32 %v712, %v710
        %v714 = vxor.u32 %v713, 2147483648
        %v715 = vsel %vm632, %v714, %v713
        %v716 = vsub.s32 4, %v692
        %v717 = vsel %vm632, %v716, %v692
        %v718 = vsel %vm631, %v422, %v715
        %v719 = vsel %vm631, 0, %v717
        %v720 = vcosq.f32.pop %v718
        %v721 = vsinq.f32.pop %v718
        %vm722 = vweird.f32 %v422
        %v723 = vand.u32 %v719, 3
        %vm724 = vcmp.lt.s32.totalorder %v723, 2
        %vm725 = vcmp.eq.s32.totalorder %v723, 0
        %v726 = vxor.u32 %v721, 2147483648
        %v727 = vsel %vm725, %v720, %v726
        %vm728 = vcmp.eq.s32.totalorder %v723, 2
        %v729 = vxor.u32 %v720, 2147483648
        %v730 = vsel %vm728, %v729, %v721
        %v731 = vsel %vm724, %v727, %v730
        %v732 = vsel %vm722, nan, %v731
        %v733 = vand.u32 2147483647, %v423
        %vm734 = vcmp.le.f32.partialorder %v733, 0.7853982
        %vm735 = vcmp.lt.s32.totalorder %v423, 0
        %v736 = vand.u32 %v423, 2139095040
        %v737 = vshrl.u32 %v736, 23
        %v738 = vsub.s32 %v737, 127
        %v739 = vand.u32 2147483647, %v423
        %v740 = vand.u32 %v739, 8388607
        %v741 = vor.u32 %v740, 8388608
        %v742 = vsub.s32 0, %v741
        %v743 = vadd.s32 %v738, 1
        %vm744 = vcmp.gt.s32.totalorder %v743, 0
        %v745 = vsel %vm744, %v743, 0
        %v746 = vshrl.u32 %v745, 5
        %v747 = vand.u32 %v745, 31
        %v748 = vsub.s32 32, %v747
        %v749 = vshrl.u32 683565275, %v748
        %v750 = vshll.u32 683565275, %v747
        %v751 = vshrl.u32 2475754826, %v748
        %v752 = vor.u32 %v750, %v751
        %v753 = vshll.u32 2475754826, %v747
        %v754 = vshrl.u32 2131351028, %v748
        %v755 = vor.u32 %v753, %v754
        %v756 = vshll.u32 2131351028, %v747
        %v757 = vshrl.u32 2102212464, %v748
        %v758 = vor.u32 %v756, %v757
        %v759 = vshll.u32 2102212464, %v747
        %v760 = vshrl.u32 920167782, %v748
        %v761 = vor.u32 %v759, %v760
        %v762 = vshll.u32 920167782, %v747
        %v763 = vshrl.u32 1326507024, %v748
        %v764 = vor.u32 %v762, %v763
        %vm765 = vcmp.lt.s32.totalorder %v746, 1
        %vm766 = vcmp.lt.s32.totalorder %v746, 2
        %vm767 = vcmp.lt.s32.totalorder %v746, 3
        %vm768 = vcmp.lt.s32.totalorder %v746, 4
        %v769 = vsel %vm765, %v749, %v752
        %v770 = vsel %vm768, %v758, 2102212464
        %v771 = vsel %vm767, %v755, %v770
        %v772 = vsel %vm766, %v769, %v771
        %v773 = vsel %vm765, %v752, %v755
        %v774 = vsel %vm768, %v761, 920167782
        %v775 = vsel %vm767, %v758, %v774
        %v776 = vsel %vm766, %v773, %v775
        %v777 = vsel %vm765, %v755, %v758
        %v778 = vsel %vm768, %v764, 1326507024
        %v779 = vsel %vm767, %v761, %v778
        %v780 = vsel %vm766, %v777, %v779
        %v781 = vshll.u32 %v741, 8
        %v782 = vmul.u32.u64.compose %v781, %v780
        %v783 = vextract.low.u32 %v782
        %v784 = vextract.high.u32 %v782
        %v785 = vmul.u32.u64.compose %v781, %v776
        %v786 = vextract.low.u32 %v785
        %v787 = vextract.high.u32 %v785
        %v788 = vmul.u32 %v781, %v772
        %v789 = vadd.s32 %v784, %v786
        %vm790 = vc.u32 %v784, %v786
        %v791 = vadd.s32 %v787, 1
        %v792 = vsel %vm790, %v791, %v787
        %v793 = vadd.s32 %v788, %v792
        %v794 = vadd.s32 %v793, 536870912
        %v795 = vshrl.u32 %v794, 30
        %v796 = vshll.u32 %v795, 30
        %v797 = vsub.s32 %v793, %v796
        %vm798 = vcmp.lt.s32.totalorder %v797, 0
        %v799 = vsub.s32 0, %v797
        %v800 = vsel %vm798, %v799, %v797
        %v801 = vclz %v800
        %v802 = vsub.s32 %v801, 2
        %vm803 = vcmp.gt.s32.totalorder 0, %v802
        %v804 = vsel %vm803, 0, %v802
        %v805 = vsub.s32 32, %v804
        %v806 = vshll.u32 %v797, %v804
        %v807 = vshrl.u32 %v789, %v805
        %v808 = vor.u32 %v806, %v807
        %v809 = vsub.s32 4294967266, %v804
        %v810 = vadd.s32 %v809, 127
        %v811 = vshll.u32 %v810, 23
        %v812 = vor.u32 4788187, %v811
        %v813 = vand.u32 2147483647, %v812
        %v815 = vcvt.s32.f32 %v808
        %v816 = vmul.f32 %v815, %v813
        %v817 = vxor.u32 %v816, 2147483648
        %v818 = vsel %vm735, %v817, %v816
        %v819 = vsub.s32 4, %v795
        %v820 = vsel %vm735, %v819, %v795
        %v821 = vsel %vm734, %v423, %v818
        %v822 = vsel %vm734, 0, %v820
        %v823 = vcosq.f32.pop %v821
        %v824 = vsinq.f32.pop %v821
        %vm825 = vweird.f32 %v423
        %v826 = vand.u32 %v822, 3
        %vm827 = vcmp.lt.s32.totalorder %v826, 2
        %vm828 = vcmp.eq.s32.totalorder %v826, 0
        %v829 = vxor.u32 %v824, 2147483648
        %v830 = vsel %vm828, %v823, %v829
        %vm831 = vcmp.eq.s32.totalorder %v826, 2
        %v832 = vxor.u32 %v823, 2147483648
        %v833 = vsel %vm831, %v832, %v824
        %v834 = vsel %vm827, %v830, %v833
        %v835 = vsel %vm825, nan, %v834
        %v836 = vmul.f32 %v402, 10.0
        %v837 = vmul.f32 %v407, 10.0
        %v838 = vmul.f32 %v412, 10.0
        %v839 = vmul.f32 %v417, 10.0
        %v840 = vmul.f32 %v836, %v836
        %v841 = vmul.f32 %v837, %v837
        %v842 = vmul.f32 %v838, %v838
        %v843 = vmul.f32 %v839, %v839
        %v844 = vsub.f32 0.0, %v840
        %v845 = vsub.f32 0.0, %v841
        %v846 = vsub.f32 0.0, %v842
        %v847 = vsub.f32 0.0, %v843
        %v848 = vmul.f32 %v844, 1.442695
        %v849 = vpow.pop %v848
        %v850 = vmul.f32 %v845, 1.442695
        %v851 = vpow.pop %v850
        %v852 = vmul.f32 %v846, 1.442695
        %v853 = vpow.pop %v852
        %v854 = vmul.f32 %v847, 1.442695
        %v855 = vpow.pop %v854
        %v856 = vmul.f32 %v526, %v849
        %v857 = vmul.f32 %v629, %v851
        %v858 = vmul.f32 %v732, %v853
        %v859 = vmul.f32 %v835, %v855
        %v860 = vld [vmem:[%s2] sm:$0xff]
        %v861 = vld [vmem:[%s2 + $0x8] sm:$0xff]
        %v862 = vld [vmem:[%s2 + $0x10] sm:$0xff]
        %v863 = vld [vmem:[%s2 + $0x18] sm:$0xff]
        %v864 = vld [vmem:[%s2 + $0x20] sm:$0xff]
        %v865 = vld [vmem:[%s2 + $0x28] sm:$0xff]
        %v866 = vld [vmem:[%s2 + $0x30] sm:$0xff]
        %v867 = vld [vmem:[%s2 + $0x38] sm:$0xff]
        %869 = vset.pattern.permute.xlu0 0
        %870 = vperm.xlu0 %869, %v229
        %v871 = vpop.permute.xlu0 %870
        %874 = vset.pattern.permute.xlu0 0
        %875 = vperm.xlu0 %874, %v230
        %v876 = vpop.permute.xlu0 %875
        %879 = vset.pattern.permute.xlu0 0
        %880 = vperm.xlu0 %879, %v231
        %v881 = vpop.permute.xlu0 %880
        %884 = vset.pattern.permute.xlu0 0
        %885 = vperm.xlu0 %884, %v232
        %v886 = vpop.permute.xlu0 %885
        %889 = vset.pattern.permute.xlu0 0
        %890 = vperm.xlu0 %889, %v233
        %v891 = vpop.permute.xlu0 %890
        %894 = vset.pattern.permute.xlu0 0
        %895 = vperm.xlu0 %894, %v234
        %v896 = vpop.permute.xlu0 %895
        %899 = vset.pattern.permute.xlu0 0
        %900 = vperm.xlu0 %899, %v235
        %v901 = vpop.permute.xlu0 %900
        %904 = vset.pattern.permute.xlu0 0
        %905 = vperm.xlu0 %904, %v236
        %v906 = vpop.permute.xlu0 %905
        %vm908 = vcmask 261120
        %v910 = vsel %vm908, %v860, 0
        %v913 = vsel %vm908, %v861, 0
        %v916 = vsel %vm908, %v862, 0
        %v919 = vsel %vm908, %v863, 0
        %v922 = vsel %vm908, %v864, 0
        %v925 = vsel %vm908, %v865, 0
        %v928 = vsel %vm908, %v866, 0
        %v931 = vsel %vm908, %v867, 0
        %933 = vmatprep.subr.mxu0 0.0
        %934 = vmatpush1.msra.mxu0 0.0
        %935 = vmatprep.subr.mxu0 0.0
        %936 = vmatpush1.msra.mxu0 0.0
        %937 = vmatprep.subr.mxu0 0.0
        %938 = vmatpush1.msra.mxu0 0.0
        %939 = vmatprep.subr.mxu0 0.0
        %940 = vmatpush1.msra.mxu0 0.0
        %941 = vmatprep.subr.mxu0 0.0
        %942 = vmatpush1.msra.mxu0 0.0
        %943 = vmatprep.subr.mxu0 0.0
        %944 = vmatpush1.msra.mxu0 0.0
        %945 = vmatprep.subr.mxu0 0.0
        %946 = vmatpush1.msra.mxu0 0.0
        %947 = vmatprep.subr.mxu0 0.0
        %948 = vmatpush1.msra.mxu0 0.0
        %949 = vmatprep.subr.mxu0 0.0
        %950 = vmatpush1.msra.mxu0 0.0
        %951 = vmatprep.subr.mxu0 0.0
        %952 = vmatpush1.msra.mxu0 0.0
        %953 = vmatprep.subr.mxu0 0.0
        %954 = vmatpush1.msra.mxu0 0.0
        %955 = vmatprep.subr.mxu0 0.0
        %956 = vmatpush1.msra.mxu0 0.0
        %957 = vmatprep.subr.mxu0 0.0
        %958 = vmatpush1.msra.mxu0 %v859
        %959 = vmatprep.subr.mxu0 0.0
        %960 = vmatpush1.msra.mxu0 %v858
        %961 = vmatprep.subr.mxu0 0.0
        %962 = vmatpush1.msra.mxu0 %v857
        %963 = vmatprep.subr.mxu0 0.0
        %964 = vmatpush1.msra.mxu0 %v856
        %965 = vmatprep.subr.mxu0 0.0
        %966 = vmatpush2.msra.mxu0 0.0
        %967 = vmatprep.subr.mxu0 0.0
        %968 = vmatpush2.msra.mxu0 0.0
        %969 = vmatprep.subr.mxu0 0.0
        %970 = vmatpush2.msra.mxu0 0.0
        %971 = vmatprep.subr.mxu0 0.0
        %972 = vmatpush2.msra.mxu0 0.0
        %973 = vmatprep.subr.mxu0 0.0
        %974 = vmatpush2.msra.mxu0 0.0
        %975 = vmatprep.subr.mxu0 0.0
        %976 = vmatpush2.msra.mxu0 0.0
        %977 = vmatprep.subr.mxu0 0.0
        %978 = vmatpush2.msra.mxu0 0.0
        %979 = vmatprep.subr.mxu0 0.0
        %980 = vmatpush2.msra.mxu0 0.0
        %981 = vmatprep.subr.mxu0 0.0
        %982 = vmatpush2.msra.mxu0 0.0
        %983 = vmatprep.subr.mxu0 0.0
        %984 = vmatpush2.msra.mxu0 0.0
        %985 = vmatprep.subr.mxu0 0.0
        %986 = vmatpush2.msra.mxu0 0.0
        %987 = vmatprep.subr.mxu0 0.0
        %988 = vmatpush2.msra.mxu0 0.0
        %989 = vmatprep.subr.mxu0 0.0
        %990 = vmatpush2.msra.mxu0 0.0
        %991 = vmatprep.subr.mxu0 0.0
        %992 = vmatpush2.msra.mxu0 0.0
        %993 = vmatprep.subr.mxu0 0.0
        %994 = vmatpush2.msra.mxu0 0.0
        %995 = vmatprep.subr.mxu0 0.0
        %996 = vmatpush2.msra.mxu0 0.0
        %997 = vmatprep.mubr.f32.mxu0 0.0
        %998 = vmatmul.mubr.f32.gmra.mxu0 %v910
        %v999 = vpop.f32.mrf.mxu0
        %v1000 = vadd.f32 %v871, %v999
        %v1001 = vpop.f32.mrf.mxu0
        %1002 = vmatprep.mubr.f32.mxu0 0.0
        %1003 = vmatmul.mubr.f32.gmra.mxu0 %v913
        %v1004 = vpop.f32.mrf.mxu0
        %v1005 = vadd.f32 %v876, %v1004
        %v1006 = vpop.f32.mrf.mxu0
        %1007 = vmatprep.mubr.f32.mxu0 0.0
        %1008 = vmatmul.mubr.f32.gmra.mxu0 %v916
        %v1009 = vpop.f32.mrf.mxu0
        %v1010 = vadd.f32 %v881, %v1009
        %v1011 = vpop.f32.mrf.mxu0
        %1012 = vmatprep.mubr.f32.mxu0 0.0
        %1013 = vmatmul.mubr.f32.gmra.mxu0 %v919
        %v1014 = vpop.f32.mrf.mxu0
        %v1015 = vadd.f32 %v886, %v1014
        %v1016 = vpop.f32.mrf.mxu0
        %1017 = vmatprep.mubr.f32.mxu0 0.0
        %1018 = vmatmul.mubr.f32.gmra.mxu0 %v922
        %v1019 = vpop.f32.mrf.mxu0
        %v1020 = vadd.f32 %v891, %v1019
        %v1021 = vpop.f32.mrf.mxu0
        %1022 = vmatprep.mubr.f32.mxu0 0.0
        %1023 = vmatmul.mubr.f32.gmra.mxu0 %v925
        %v1024 = vpop.f32.mrf.mxu0
        %v1025 = vadd.f32 %v896, %v1024
        %v1026 = vpop.f32.mrf.mxu0
        %1027 = vmatprep.mubr.f32.mxu0 0.0
        %1028 = vmatmul.mubr.f32.gmra.mxu0 %v928
        %v1029 = vpop.f32.mrf.mxu0
        %v1030 = vadd.f32 %v901, %v1029
        %v1031 = vpop.f32.mrf.mxu0
        %1032 = vmatprep.mubr.f32.mxu0 0.0
        %1033 = vmatmul.mubr.f32.gmra.mxu0 %v931
        %v1034 = vpop.f32.mrf.mxu0
        %v1035 = vadd.f32 %v906, %v1034
        %v1036 = vpop.f32.mrf.mxu0
        %1037 = vdwg.mxu0
        %v1038 = vmul.f32 %v1000, 10.0
        %v1039 = vmul.f32 %v1005, 10.0
        %v1040 = vmul.f32 %v1010, 10.0
        %v1041 = vmul.f32 %v1015, 10.0
        %v1042 = vand.u32 2147483647, %v1038
        %vm1043 = vcmp.le.f32.partialorder %v1042, 0.7853982
        %vm1044 = vcmp.lt.s32.totalorder %v1038, 0
        %v1045 = vand.u32 %v1038, 2139095040
        %v1046 = vshrl.u32 %v1045, 23
        %v1047 = vsub.s32 %v1046, 127
        %v1048 = vand.u32 2147483647, %v1038
        %v1049 = vand.u32 %v1048, 8388607
        %v1050 = vor.u32 %v1049, 8388608
        %v1051 = vsub.s32 0, %v1050
        %v1052 = vadd.s32 %v1047, 1
        %vm1053 = vcmp.gt.s32.totalorder %v1052, 0
        %v1054 = vsel %vm1053, %v1052, 0
        %v1055 = vshrl.u32 %v1054, 5
        %v1056 = vand.u32 %v1054, 31
        %v1057 = vsub.s32 32, %v1056
        %v1058 = vshrl.u32 683565275, %v1057
        %v1059 = vshll.u32 683565275, %v1056
        %v1060 = vshrl.u32 2475754826, %v1057
        %v1061 = vor.u32 %v1059, %v1060
        %v1062 = vshll.u32 2475754826, %v1056
        %v1063 = vshrl.u32 2131351028, %v1057
        %v1064 = vor.u32 %v1062, %v1063
        %v1065 = vshll.u32 2131351028, %v1056
        %v1066 = vshrl.u32 2102212464, %v1057
        %v1067 = vor.u32 %v1065, %v1066
        %v1068 = vshll.u32 2102212464, %v1056
        %v1069 = vshrl.u32 920167782, %v1057
        %v1070 = vor.u32 %v1068, %v1069
        %v1071 = vshll.u32 920167782, %v1056
        %v1072 = vshrl.u32 1326507024, %v1057
        %v1073 = vor.u32 %v1071, %v1072
        %vm1074 = vcmp.lt.s32.totalorder %v1055, 1
        %vm1075 = vcmp.lt.s32.totalorder %v1055, 2
        %vm1076 = vcmp.lt.s32.totalorder %v1055, 3
        %vm1077 = vcmp.lt.s32.totalorder %v1055, 4
        %v1078 = vsel %vm1074, %v1058, %v1061
        %v1079 = vsel %vm1077, %v1067, 2102212464
        %v1080 = vsel %vm1076, %v1064, %v1079
        %v1081 = vsel %vm1075, %v1078, %v1080
        %v1082 = vsel %vm1074, %v1061, %v1064
        %v1083 = vsel %vm1077, %v1070, 920167782
        %v1084 = vsel %vm1076, %v1067, %v1083
        %v1085 = vsel %vm1075, %v1082, %v1084
        %v1086 = vsel %vm1074, %v1064, %v1067
        %v1087 = vsel %vm1077, %v1073, 1326507024
        %v1088 = vsel %vm1076, %v1070, %v1087
        %v1089 = vsel %vm1075, %v1086, %v1088
        %v1090 = vshll.u32 %v1050, 8
        %v1091 = vmul.u32.u64.compose %v1090, %v1089
        %v1092 = vextract.low.u32 %v1091
        %v1093 = vextract.high.u32 %v1091
        %v1094 = vmul.u32.u64.compose %v1090, %v1085
        %v1095 = vextract.low.u32 %v1094
        %v1096 = vextract.high.u32 %v1094
        %v1097 = vmul.u32 %v1090, %v1081
        %v1098 = vadd.s32 %v1093, %v1095
        %vm1099 = vc.u32 %v1093, %v1095
        %v1100 = vadd.s32 %v1096, 1
        %v1101 = vsel %vm1099, %v1100, %v1096
        %v1102 = vadd.s32 %v1097, %v1101
        %v1103 = vadd.s32 %v1102, 536870912
        %v1104 = vshrl.u32 %v1103, 30
        %v1105 = vshll.u32 %v1104, 30
        %v1106 = vsub.s32 %v1102, %v1105
        %vm1107 = vcmp.lt.s32.totalorder %v1106, 0
        %v1108 = vsub.s32 0, %v1106
        %v1109 = vsel %vm1107, %v1108, %v1106
        %v1110 = vclz %v1109
        %v1111 = vsub.s32 %v1110, 2
        %vm1112 = vcmp.gt.s32.totalorder 0, %v1111
        %v1113 = vsel %vm1112, 0, %v1111
        %v1114 = vsub.s32 32, %v1113
        %v1115 = vshll.u32 %v1106, %v1113
        %v1116 = vshrl.u32 %v1098, %v1114
        %v1117 = vor.u32 %v1115, %v1116
        %v1118 = vsub.s32 4294967266, %v1113
        %v1119 = vadd.s32 %v1118, 127
        %v1120 = vshll.u32 %v1119, 23
        %v1121 = vor.u32 4788187, %v1120
        %v1122 = vand.u32 2147483647, %v1121
        %v1124 = vcvt.s32.f32 %v1117
        %v1125 = vmul.f32 %v1124, %v1122
        %v1126 = vxor.u32 %v1125, 2147483648
        %v1127 = vsel %vm1044, %v1126, %v1125
        %v1128 = vsub.s32 4, %v1104
        %v1129 = vsel %vm1044, %v1128, %v1104
        %v1130 = vsel %vm1043, %v1038, %v1127
        %v1131 = vsel %vm1043, 0, %v1129
        %v1132 = vcosq.f32.pop %v1130
        %v1133 = vsinq.f32.pop %v1130
        %vm1134 = vweird.f32 %v1038
        %v1135 = vand.u32 %v1131, 3
        %vm1136 = vcmp.lt.s32.totalorder %v1135, 2
        %vm1137 = vcmp.eq.s32.totalorder %v1135, 0
        %v1138 = vxor.u32 %v1133, 2147483648
        %v1139 = vsel %vm1137, %v1132, %v1138
        %vm1140 = vcmp.eq.s32.totalorder %v1135, 2
        %v1141 = vxor.u32 %v1132, 2147483648
        %v1142 = vsel %vm1140, %v1141, %v1133
        %v1143 = vsel %vm1136, %v1139, %v1142
        %v1144 = vsel %vm1134, nan, %v1143
        %v1145 = vand.u32 2147483647, %v1039
        %vm1146 = vcmp.le.f32.partialorder %v1145, 0.7853982
        %vm1147 = vcmp.lt.s32.totalorder %v1039, 0
        %v1148 = vand.u32 %v1039, 2139095040
        %v1149 = vshrl.u32 %v1148, 23
        %v1150 = vsub.s32 %v1149, 127
        %v1151 = vand.u32 2147483647, %v1039
        %v1152 = vand.u32 %v1151, 8388607
        %v1153 = vor.u32 %v1152, 8388608
        %v1154 = vsub.s32 0, %v1153
        %v1155 = vadd.s32 %v1150, 1
        %vm1156 = vcmp.gt.s32.totalorder %v1155, 0
        %v1157 = vsel %vm1156, %v1155, 0
        %v1158 = vshrl.u32 %v1157, 5
        %v1159 = vand.u32 %v1157, 31
        %v1160 = vsub.s32 32, %v1159
        %v1161 = vshrl.u32 683565275, %v1160
        %v1162 = vshll.u32 683565275, %v1159
        %v1163 = vshrl.u32 2475754826, %v1160
        %v1164 = vor.u32 %v1162, %v1163
        %v1165 = vshll.u32 2475754826, %v1159
        %v1166 = vshrl.u32 2131351028, %v1160
        %v1167 = vor.u32 %v1165, %v1166
        %v1168 = vshll.u32 2131351028, %v1159
        %v1169 = vshrl.u32 2102212464, %v1160
        %v1170 = vor.u32 %v1168, %v1169
        %v1171 = vshll.u32 2102212464, %v1159
        %v1172 = vshrl.u32 920167782, %v1160
        %v1173 = vor.u32 %v1171, %v1172
        %v1174 = vshll.u32 920167782, %v1159
        %v1175 = vshrl.u32 1326507024, %v1160
        %v1176 = vor.u32 %v1174, %v1175
        %vm1177 = vcmp.lt.s32.totalorder %v1158, 1
        %vm1178 = vcmp.lt.s32.totalorder %v1158, 2
        %vm1179 = vcmp.lt.s32.totalorder %v1158, 3
        %vm1180 = vcmp.lt.s32.totalorder %v1158, 4
        %v1181 = vsel %vm1177, %v1161, %v1164
        %v1182 = vsel %vm1180, %v1170, 2102212464
        %v1183 = vsel %vm1179, %v1167, %v1182
        %v1184 = vsel %vm1178, %v1181, %v1183
        %v1185 = vsel %vm1177, %v1164, %v1167
        %v1186 = vsel %vm1180, %v1173, 920167782
        %v1187 = vsel %vm1179, %v1170, %v1186
        %v1188 = vsel %vm1178, %v1185, %v1187
        %v1189 = vsel %vm1177, %v1167, %v1170
        %v1190 = vsel %vm1180, %v1176, 1326507024
        %v1191 = vsel %vm1179, %v1173, %v1190
        %v1192 = vsel %vm1178, %v1189, %v1191
        %v1193 = vshll.u32 %v1153, 8
        %v1194 = vmul.u32.u64.compose %v1193, %v1192
        %v1195 = vextract.low.u32 %v1194
        %v1196 = vextract.high.u32 %v1194
        %v1197 = vmul.u32.u64.compose %v1193, %v1188
        %v1198 = vextract.low.u32 %v1197
        %v1199 = vextract.high.u32 %v1197
        %v1200 = vmul.u32 %v1193, %v1184
        %v1201 = vadd.s32 %v1196, %v1198
        %vm1202 = vc.u32 %v1196, %v1198
        %v1203 = vadd.s32 %v1199, 1
        %v1204 = vsel %vm1202, %v1203, %v1199
        %v1205 = vadd.s32 %v1200, %v1204
        %v1206 = vadd.s32 %v1205, 536870912
        %v1207 = vshrl.u32 %v1206, 30
        %v1208 = vshll.u32 %v1207, 30
        %v1209 = vsub.s32 %v1205, %v1208
        %vm1210 = vcmp.lt.s32.totalorder %v1209, 0
        %v1211 = vsub.s32 0, %v1209
        %v1212 = vsel %vm1210, %v1211, %v1209
        %v1213 = vclz %v1212
        %v1214 = vsub.s32 %v1213, 2
        %vm1215 = vcmp.gt.s32.totalorder 0, %v1214
        %v1216 = vsel %vm1215, 0, %v1214
        %v1217 = vsub.s32 32, %v1216
        %v1218 = vshll.u32 %v1209, %v1216
        %v1219 = vshrl.u32 %v1201, %v1217
        %v1220 = vor.u32 %v1218, %v1219
        %v1221 = vsub.s32 4294967266, %v1216
        %v1222 = vadd.s32 %v1221, 127
        %v1223 = vshll.u32 %v1222, 23
        %v1224 = vor.u32 4788187, %v1223
        %v1225 = vand.u32 2147483647, %v1224
        %v1227 = vcvt.s32.f32 %v1220
        %v1228 = vmul.f32 %v1227, %v1225
        %v1229 = vxor.u32 %v1228, 2147483648
        %v1230 = vsel %vm1147, %v1229, %v1228
        %v1231 = vsub.s32 4, %v1207
        %v1232 = vsel %vm1147, %v1231, %v1207
        %v1233 = vsel %vm1146, %v1039, %v1230
        %v1234 = vsel %vm1146, 0, %v1232
        %v1235 = vcosq.f32.pop %v1233
        %v1236 = vsinq.f32.pop %v1233
        %vm1237 = vweird.f32 %v1039
        %v1238 = vand.u32 %v1234, 3
        %vm1239 = vcmp.lt.s32.totalorder %v1238, 2
        %vm1240 = vcmp.eq.s32.totalorder %v1238, 0
        %v1241 = vxor.u32 %v1236, 2147483648
        %v1242 = vsel %vm1240, %v1235, %v1241
        %vm1243 = vcmp.eq.s32.totalorder %v1238, 2
        %v1244 = vxor.u32 %v1235, 2147483648
        %v1245 = vsel %vm1243, %v1244, %v1236
        %v1246 = vsel %vm1239, %v1242, %v1245
        %v1247 = vsel %vm1237, nan, %v1246
        %v1248 = vand.u32 2147483647, %v1040
        %vm1249 = vcmp.le.f32.partialorder %v1248, 0.7853982
        %vm1250 = vcmp.lt.s32.totalorder %v1040, 0
        %v1251 = vand.u32 %v1040, 2139095040
        %v1252 = vshrl.u32 %v1251, 23
        %v1253 = vsub.s32 %v1252, 127
        %v1254 = vand.u32 2147483647, %v1040
        %v1255 = vand.u32 %v1254, 8388607
        %v1256 = vor.u32 %v1255, 8388608
        %v1257 = vsub.s32 0, %v1256
        %v1258 = vadd.s32 %v1253, 1
        %vm1259 = vcmp.gt.s32.totalorder %v1258, 0
        %v1260 = vsel %vm1259, %v1258, 0
        %v1261 = vshrl.u32 %v1260, 5
        %v1262 = vand.u32 %v1260, 31
        %v1263 = vsub.s32 32, %v1262
        %v1264 = vshrl.u32 683565275, %v1263
        %v1265 = vshll.u32 683565275, %v1262
        %v1266 = vshrl.u32 2475754826, %v1263
        %v1267 = vor.u32 %v1265, %v1266
        %v1268 = vshll.u32 2475754826, %v1262
        %v1269 = vshrl.u32 2131351028, %v1263
        %v1270 = vor.u32 %v1268, %v1269
        %v1271 = vshll.u32 2131351028, %v1262
        %v1272 = vshrl.u32 2102212464, %v1263
        %v1273 = vor.u32 %v1271, %v1272
        %v1274 = vshll.u32 2102212464, %v1262
        %v1275 = vshrl.u32 920167782, %v1263
        %v1276 = vor.u32 %v1274, %v1275
        %v1277 = vshll.u32 920167782, %v1262
        %v1278 = vshrl.u32 1326507024, %v1263
        %v1279 = vor.u32 %v1277, %v1278
        %vm1280 = vcmp.lt.s32.totalorder %v1261, 1
        %vm1281 = vcmp.lt.s32.totalorder %v1261, 2
        %vm1282 = vcmp.lt.s32.totalorder %v1261, 3
        %vm1283 = vcmp.lt.s32.totalorder %v1261, 4
        %v1284 = vsel %vm1280, %v1264, %v1267
        %v1285 = vsel %vm1283, %v1273, 2102212464
        %v1286 = vsel %vm1282, %v1270, %v1285
        %v1287 = vsel %vm1281, %v1284, %v1286
        %v1288 = vsel %vm1280, %v1267, %v1270
        %v1289 = vsel %vm1283, %v1276, 920167782
        %v1290 = vsel %vm1282, %v1273, %v1289
        %v1291 = vsel %vm1281, %v1288, %v1290
        %v1292 = vsel %vm1280, %v1270, %v1273
        %v1293 = vsel %vm1283, %v1279, 1326507024
        %v1294 = vsel %vm1282, %v1276, %v1293
        %v1295 = vsel %vm1281, %v1292, %v1294
        %v1296 = vshll.u32 %v1256, 8
        %v1297 = vmul.u32.u64.compose %v1296, %v1295
        %v1298 = vextract.low.u32 %v1297
        %v1299 = vextract.high.u32 %v1297
        %v1300 = vmul.u32.u64.compose %v1296, %v1291
        %v1301 = vextract.low.u32 %v1300
        %v1302 = vextract.high.u32 %v1300
        %v1303 = vmul.u32 %v1296, %v1287
        %v1304 = vadd.s32 %v1299, %v1301
        %vm1305 = vc.u32 %v1299, %v1301
        %v1306 = vadd.s32 %v1302, 1
        %v1307 = vsel %vm1305, %v1306, %v1302
        %v1308 = vadd.s32 %v1303, %v1307
        %v1309 = vadd.s32 %v1308, 536870912
        %v1310 = vshrl.u32 %v1309, 30
        %v1311 = vshll.u32 %v1310, 30
        %v1312 = vsub.s32 %v1308, %v1311
        %vm1313 = vcmp.lt.s32.totalorder %v1312, 0
        %v1314 = vsub.s32 0, %v1312
        %v1315 = vsel %vm1313, %v1314, %v1312
        %v1316 = vclz %v1315
        %v1317 = vsub.s32 %v1316, 2
        %vm1318 = vcmp.gt.s32.totalorder 0, %v1317
        %v1319 = vsel %vm1318, 0, %v1317
        %v1320 = vsub.s32 32, %v1319
        %v1321 = vshll.u32 %v1312, %v1319
        %v1322 = vshrl.u32 %v1304, %v1320
        %v1323 = vor.u32 %v1321, %v1322
        %v1324 = vsub.s32 4294967266, %v1319
        %v1325 = vadd.s32 %v1324, 127
        %v1326 = vshll.u32 %v1325, 23
        %v1327 = vor.u32 4788187, %v1326
        %v1328 = vand.u32 2147483647, %v1327
        %v1330 = vcvt.s32.f32 %v1323
        %v1331 = vmul.f32 %v1330, %v1328
        %v1332 = vxor.u32 %v1331, 2147483648
        %v1333 = vsel %vm1250, %v1332, %v1331
        %v1334 = vsub.s32 4, %v1310
        %v1335 = vsel %vm1250, %v1334, %v1310
        %v1336 = vsel %vm1249, %v1040, %v1333
        %v1337 = vsel %vm1249, 0, %v1335
        %v1338 = vcosq.f32.pop %v1336
        %v1339 = vsinq.f32.pop %v1336
        %vm1340 = vweird.f32 %v1040
        %v1341 = vand.u32 %v1337, 3
        %vm1342 = vcmp.lt.s32.totalorder %v1341, 2
        %vm1343 = vcmp.eq.s32.totalorder %v1341, 0
        %v1344 = vxor.u32 %v1339, 2147483648
        %v1345 = vsel %vm1343, %v1338, %v1344
        %vm1346 = vcmp.eq.s32.totalorder %v1341, 2
        %v1347 = vxor.u32 %v1338, 2147483648
        %v1348 = vsel %vm1346, %v1347, %v1339
        %v1349 = vsel %vm1342, %v1345, %v1348
        %v1350 = vsel %vm1340, nan, %v1349
        %v1351 = vand.u32 2147483647, %v1041
        %vm1352 = vcmp.le.f32.partialorder %v1351, 0.7853982
        %vm1353 = vcmp.lt.s32.totalorder %v1041, 0
        %v1354 = vand.u32 %v1041, 2139095040
        %v1355 = vshrl.u32 %v1354, 23
        %v1356 = vsub.s32 %v1355, 127
        %v1357 = vand.u32 2147483647, %v1041
        %v1358 = vand.u32 %v1357, 8388607
        %v1359 = vor.u32 %v1358, 8388608
        %v1360 = vsub.s32 0, %v1359
        %v1361 = vadd.s32 %v1356, 1
        %vm1362 = vcmp.gt.s32.totalorder %v1361, 0
        %v1363 = vsel %vm1362, %v1361, 0
        %v1364 = vshrl.u32 %v1363, 5
        %v1365 = vand.u32 %v1363, 31
        %v1366 = vsub.s32 32, %v1365
        %v1367 = vshrl.u32 683565275, %v1366
        %v1368 = vshll.u32 683565275, %v1365
        %v1369 = vshrl.u32 2475754826, %v1366
        %v1370 = vor.u32 %v1368, %v1369
        %v1371 = vshll.u32 2475754826, %v1365
        %v1372 = vshrl.u32 2131351028, %v1366
        %v1373 = vor.u32 %v1371, %v1372
        %v1374 = vshll.u32 2131351028, %v1365
        %v1375 = vshrl.u32 2102212464, %v1366
        %v1376 = vor.u32 %v1374, %v1375
        %v1377 = vshll.u32 2102212464, %v1365
        %v1378 = vshrl.u32 920167782, %v1366
        %v1379 = vor.u32 %v1377, %v1378
        %v1380 = vshll.u32 920167782, %v1365
        %v1381 = vshrl.u32 1326507024, %v1366
        %v1382 = vor.u32 %v1380, %v1381
        %vm1383 = vcmp.lt.s32.totalorder %v1364, 1
        %vm1384 = vcmp.lt.s32.totalorder %v1364, 2
        %vm1385 = vcmp.lt.s32.totalorder %v1364, 3
        %vm1386 = vcmp.lt.s32.totalorder %v1364, 4
        %v1387 = vsel %vm1383, %v1367, %v1370
        %v1388 = vsel %vm1386, %v1376, 2102212464
        %v1389 = vsel %vm1385, %v1373, %v1388
        %v1390 = vsel %vm1384, %v1387, %v1389
        %v1391 = vsel %vm1383, %v1370, %v1373
        %v1392 = vsel %vm1386, %v1379, 920167782
        %v1393 = vsel %vm1385, %v1376, %v1392
        %v1394 = vsel %vm1384, %v1391, %v1393
        %v1395 = vsel %vm1383, %v1373, %v1376
        %v1396 = vsel %vm1386, %v1382, 1326507024
        %v1397 = vsel %vm1385, %v1379, %v1396
        %v1398 = vsel %vm1384, %v1395, %v1397
        %v1399 = vshll.u32 %v1359, 8
        %v1400 = vmul.u32.u64.compose %v1399, %v1398
        %v1401 = vextract.low.u32 %v1400
        %v1402 = vextract.high.u32 %v1400
        %v1403 = vmul.u32.u64.compose %v1399, %v1394
        %v1404 = vextract.low.u32 %v1403
        %v1405 = vextract.high.u32 %v1403
        %v1406 = vmul.u32 %v1399, %v1390
        %v1407 = vadd.s32 %v1402, %v1404
        %vm1408 = vc.u32 %v1402, %v1404
        %v1409 = vadd.s32 %v1405, 1
        %v1410 = vsel %vm1408, %v1409, %v1405
        %v1411 = vadd.s32 %v1406, %v1410
        %v1412 = vadd.s32 %v1411, 536870912
        %v1413 = vshrl.u32 %v1412, 30
        %v1414 = vshll.u32 %v1413, 30
        %v1415 = vsub.s32 %v1411, %v1414
        %vm1416 = vcmp.lt.s32.totalorder %v1415, 0
        %v1417 = vsub.s32 0, %v1415
        %v1418 = vsel %vm1416, %v1417, %v1415
        %v1419 = vclz %v1418
        %v1420 = vsub.s32 %v1419, 2
        %vm1421 = vcmp.gt.s32.totalorder 0, %v1420
        %v1422 = vsel %vm1421, 0, %v1420
        %v1423 = vsub.s32 32, %v1422
        %v1424 = vshll.u32 %v1415, %v1422
        %v1425 = vshrl.u32 %v1407, %v1423
        %v1426 = vor.u32 %v1424, %v1425
        %v1427 = vsub.s32 4294967266, %v1422
        %v1428 = vadd.s32 %v1427, 127
        %v1429 = vshll.u32 %v1428, 23
        %v1430 = vor.u32 4788187, %v1429
        %v1431 = vand.u32 2147483647, %v1430
        %v1433 = vcvt.s32.f32 %v1426
        %v1434 = vmul.f32 %v1433, %v1431
        %v1435 = vxor.u32 %v1434, 2147483648
        %v1436 = vsel %vm1353, %v1435, %v1434
        %v1437 = vsub.s32 4, %v1413
        %v1438 = vsel %vm1353, %v1437, %v1413
        %v1439 = vsel %vm1352, %v1041, %v1436
        %v1440 = vsel %vm1352, 0, %v1438
        %v1441 = vcosq.f32.pop %v1439
        %v1442 = vsinq.f32.pop %v1439
        %vm1443 = vweird.f32 %v1041
        %v1444 = vand.u32 %v1440, 3
        %vm1445 = vcmp.lt.s32.totalorder %v1444, 2
        %vm1446 = vcmp.eq.s32.totalorder %v1444, 0
        %v1447 = vxor.u32 %v1442, 2147483648
        %v1448 = vsel %vm1446, %v1441, %v1447
        %vm1449 = vcmp.eq.s32.totalorder %v1444, 2
        %v1450 = vxor.u32 %v1441, 2147483648
        %v1451 = vsel %vm1449, %v1450, %v1442
        %v1452 = vsel %vm1445, %v1448, %v1451
        %v1453 = vsel %vm1443, nan, %v1452
        %v1454 = vmul.f32 %v1020, 10.0
        %v1455 = vmul.f32 %v1025, 10.0
        %v1456 = vmul.f32 %v1030, 10.0
        %v1457 = vmul.f32 %v1035, 10.0
        %v1458 = vmul.f32 %v1454, %v1454
        %v1459 = vmul.f32 %v1455, %v1455
        %v1460 = vmul.f32 %v1456, %v1456
        %v1461 = vmul.f32 %v1457, %v1457
        %v1462 = vsub.f32 0.0, %v1458
        %v1463 = vsub.f32 0.0, %v1459
        %v1464 = vsub.f32 0.0, %v1460
        %v1465 = vsub.f32 0.0, %v1461
        %v1466 = vmul.f32 %v1462, 1.442695
        %v1467 = vpow.pop %v1466
        %v1468 = vmul.f32 %v1463, 1.442695
        %v1469 = vpow.pop %v1468
        %v1470 = vmul.f32 %v1464, 1.442695
        %v1471 = vpow.pop %v1470
        %v1472 = vmul.f32 %v1465, 1.442695
        %v1473 = vpow.pop %v1472
        %v1474 = vmul.f32 %v1144, %v1467
        %v1475 = vmul.f32 %v1247, %v1469
        %v1476 = vmul.f32 %v1350, %v1471
        %v1477 = vmul.f32 %v1453, %v1473
        %v1478 = vld [vmem:[%s3] sm:$0x7]
        %1480 = vset.pattern.permute.xlu0 0
        %1481 = vperm.xlu0 %1480, %v237
        %v1482 = vpop.permute.xlu0 %1481
        %v1485 = vsel %vm908, %v1478, 0
        %1487 = vmatprep.subr.mxu0 0.0
        %1488 = vmatpush1.msra.mxu0 0.0
        %1489 = vmatprep.subr.mxu0 0.0
        %1490 = vmatpush1.msra.mxu0 0.0
        %1491 = vmatprep.subr.mxu0 0.0
        %1492 = vmatpush1.msra.mxu0 0.0
        %1493 = vmatprep.subr.mxu0 0.0
        %1494 = vmatpush1.msra.mxu0 0.0
        %1495 = vmatprep.subr.mxu0 0.0
        %1496 = vmatpush1.msra.mxu0 0.0
        %1497 = vmatprep.subr.mxu0 0.0
        %1498 = vmatpush1.msra.mxu0 0.0
        %1499 = vmatprep.subr.mxu0 0.0
        %1500 = vmatpush1.msra.mxu0 0.0
        %1501 = vmatprep.subr.mxu0 0.0
        %1502 = vmatpush1.msra.mxu0 0.0
        %1503 = vmatprep.subr.mxu0 0.0
        %1504 = vmatpush1.msra.mxu0 0.0
        %1505 = vmatprep.subr.mxu0 0.0
        %1506 = vmatpush1.msra.mxu0 0.0
        %1507 = vmatprep.subr.mxu0 0.0
        %1508 = vmatpush1.msra.mxu0 0.0
        %1509 = vmatprep.subr.mxu0 0.0
        %1510 = vmatpush1.msra.mxu0 0.0
        %1511 = vmatprep.subr.mxu0 0.0
        %1512 = vmatpush1.msra.mxu0 %v1477
        %1513 = vmatprep.subr.mxu0 0.0
        %1514 = vmatpush1.msra.mxu0 %v1476
        %1515 = vmatprep.subr.mxu0 0.0
        %1516 = vmatpush1.msra.mxu0 %v1475
        %1517 = vmatprep.subr.mxu0 0.0
        %1518 = vmatpush1.msra.mxu0 %v1474
        %1519 = vmatprep.subr.mxu0 0.0
        %1520 = vmatpush2.msra.mxu0 0.0
        %1521 = vmatprep.subr.mxu0 0.0
        %1522 = vmatpush2.msra.mxu0 0.0
        %1523 = vmatprep.subr.mxu0 0.0
        %1524 = vmatpush2.msra.mxu0 0.0
        %1525 = vmatprep.subr.mxu0 0.0
        %1526 = vmatpush2.msra.mxu0 0.0
        %1527 = vmatprep.subr.mxu0 0.0
        %1528 = vmatpush2.msra.mxu0 0.0
        %1529 = vmatprep.subr.mxu0 0.0
        %1530 = vmatpush2.msra.mxu0 0.0
        %1531 = vmatprep.subr.mxu0 0.0
        %1532 = vmatpush2.msra.mxu0 0.0
        %1533 = vmatprep.subr.mxu0 0.0
        %1534 = vmatpush2.msra.mxu0 0.0
        %1535 = vmatprep.subr.mxu0 0.0
        %1536 = vmatpush2.msra.mxu0 0.0
        %1537 = vmatprep.subr.mxu0 0.0
        %1538 = vmatpush2.msra.mxu0 0.0
        %1539 = vmatprep.subr.mxu0 0.0
        %1540 = vmatpush2.msra.mxu0 0.0
        %1541 = vmatprep.subr.mxu0 0.0
        %1542 = vmatpush2.msra.mxu0 0.0
        %1543 = vmatprep.subr.mxu0 0.0
        %1544 = vmatpush2.msra.mxu0 0.0
        %1545 = vmatprep.subr.mxu0 0.0
        %1546 = vmatpush2.msra.mxu0 0.0
        %1547 = vmatprep.subr.mxu0 0.0
        %1548 = vmatpush2.msra.mxu0 0.0
        %1549 = vmatprep.subr.mxu0 0.0
        %1550 = vmatpush2.msra.mxu0 0.0
        %1551 = vmatprep.mubr.f32.mxu0 0.0
        %1552 = vmatmul.mubr.f32.gmra.mxu0 %v1485
        %v1553 = vpop.f32.mrf.mxu0
        %v1554 = vadd.f32 %v1482, %v1553
        %v1555 = vpop.f32.mrf.mxu0
        %1556 = vdwg.mxu0
        %1557 = vst [vmem:[%s215] sm:$0x7] %v1554
        %s1558 = sand.u32 %s137, 1
        %s1559 = scalar_lea.sflag [#allocation3], %s1558
        %s1560 = sand.u32 %s137, 1
        %s1561 = smul.addr %s1560, 4
        %s1562 = scalar_lea.vmem [#allocation2], %s1561
        // Predicated region
        $region41: #{tpu_custom_call.1} parent=39 // pred_check
          %p1563 = pneg %p147
        $region42: #{tpu_custom_call.1} parent=39 // pred_check_branch
          %1565 = sbr.rel (%p1563) target = $region44
        $region43: #{tpu_custom_call.1} parent=39 // pred_region
          %s1567 = ssub.s32 64, 64
          %1568 = vsyncadd %s1559, %s1567
          %s1569 = smul.addr %s19, 64
          %s1570 = scalar_lea.hbm %s5, %s1569
          %s1572 = sshll.u32 %s1562, 4
          %s1573 = int_to_ptr.vmem [resolvable:$true] %s1572
          %1575 = dma.vmem_to_hbm [thread:$0]  %s1573, 64, %s1570, %s1559
        $region44: #{tpu_custom_call.1} parent=39 // pred_fallthru
          _
      $region40: #{tpu_custom_call.1} parent=5 // pred_fallthru
        _
      %p1576 = scmp.le.s32.totalorder 2, %s14
      // Predicated region
      $region45: #{tpu_custom_call.1} parent=5 // pred_check
        %p1577 = pneg %p1576
      $region46: #{tpu_custom_call.1} parent=5 // pred_check_branch
        %1579 = sbr.rel (%p1577) target = $region48
      $region47: #{tpu_custom_call.1} parent=5 // pred_region
        %s1580 = ssub.s32 %s14, 2
        // Predicated region
        $region49: #{tpu_custom_call.1} parent=47 // pred_check
          %p1581 = pneg %p153
        $region50: #{tpu_custom_call.1} parent=47 // pred_check_branch
          %1583 = sbr.rel (%p1581) target = $region52
        $region51: #{tpu_custom_call.1} parent=47 // pred_region
          %s1584 = sand.u32 %s138, 1
          %s1585 = scalar_lea.sflag [#allocation3], %s1584
          %s1586 = sand.u32 %s138, 1
          %s1587 = smul.addr %s1586, 4
          %s1588 = scalar_lea.vmem [#allocation2], %s1587
          %1589 = dma.done %s1585, 64
        $region52: #{tpu_custom_call.1} parent=47 // pred_fallthru
          _
      $region48: #{tpu_custom_call.1} parent=5 // pred_fallthru
        _
    $region6: #{tpu_custom_call.1} parent=1 // loop_footer
      %s18 = sadd.s32 1, %s14
    $region7: #{tpu_custom_call.1} parent=1 // loop_footer_branch
      %13 = sbr.rel target = $region3
    $region8: #{tpu_custom_call.1} parent=1 // loop_exit
      _
    %1590 = vsyncpa [#allocation3], 1
    %s1591 = scalar_lea.sflag [#allocation3], 1
    %1592 = vsyncpa %s1591, 1

</llo_original>
